<compile_context>
chip_gen: v7x
topology: tpu7x:2x2x1
jax: 0.10.0
libtpu: 0.0.40
codegen_flags: <defaults>
</compile_context>

<pallas_src>
import functools

import jax
import jax.numpy as jnp
from jax.experimental import pallas as pl
from jax.experimental.pallas import tpu as pltpu

BF16 = jnp.bfloat16
F32 = jnp.float32


# ----------------------------- helpers ---------------------------------------

def _full_spec(shape):
    """Full-array block (single grid step)."""
    return pl.BlockSpec(shape, lambda i: (0,) * len(shape))


# ----------------------------- fused Pallas kernel ----------------------------

def _fused_mpn_kernel(*refs, n_mp, n_dec):
    """Entire SupervisedMPN trunk in one kernel; everything stays in VMEM.

    Ref order (inputs):
      node_feat[bf16], edge_feat[bf16], srcdst_oh[bf16 E,2N], agg_t[bf16 N,E],
      inv_deg[f32 N,1],
      node_enc_w[bf16], node_enc_b[f32], edge_enc_w[bf16], edge_enc_b[f32],
      n_mp x (we_e[bf16 L,L], w_sd[bf16 L,2L], be[f32 1,L],
              w_nm[bf16 2L,L], bn[f32 1,L]),
      n_dec x (w[bf16 L,L], b[f32 1,L])
    Last ref is the output: decoded node latents [N, L] f32 (lane dense).
    """
    out_ref = refs[-1]
    it = iter(refs[:-1])

    def nxt():
        return next(it)

    def dot(a, b):
        # bf16 operands, f32 accumulation on the MXU.
        return jnp.dot(a, b, preferred_element_type=jnp.float32)

    def lin_relu(x_bf16, w_ref, b_ref):
        # matmul in bf16, bias add + ReLU in f32.
        return jnp.maximum(dot(x_bf16, w_ref[...]) + b_ref[...], 0.0)

    node_feat = nxt()[...]   # [N, Dn] bf16
    edge_feat = nxt()[...]   # [E, De] bf16
    srcdst_oh = nxt()[...]   # [E, 2N] bf16 (exact 0/1):  [src_oh | dst_oh]
    agg_t = nxt()[...]       # [N, E]  bf16 (exact 0/1):  dst_oh.T
    inv_deg = nxt()[...]     # [N, 1]  f32  (exact mean normalization)

    # --- encoders ---
    node = lin_relu(node_feat, nxt(), nxt())   # [N, L] f32
    edge = lin_relu(edge_feat, nxt(), nxt())   # [E, L] f32

    # --- message passing steps (statically unrolled, weights resident in VMEM) ---
    for _ in range(n_mp):
        we_e, w_sd, be, w_nm, bn = (nxt() for _ in range(5))
        latent = node.shape[1]
        node_b = node.astype(BF16)
        edge_b = edge.astype(BF16)

        # Fused src/dst pre-projection on the (small) N axis: [N,L]x[L,2L].
        sd = dot(node_b, w_sd[...])                                # [N, 2L] f32
        # Stack to [2N, L] and do BOTH gathers as one [E,2N]x[2N,L] matmul:
        #   [src_oh | dst_oh] @ [node@We_s ; node@We_d]
        #     == src_oh @ (node@We_s) + dst_oh @ (node@We_d)   (exact: 0/1 gather)
        sd_stack = jnp.concatenate(
            [sd[:, :latent], sd[:, latent:]], axis=0).astype(BF16)  # [2N, L] bf16
        gathered = dot(srcdst_oh, sd_stack)                         # [E, L] f32

        msg = dot(edge_b, we_e[...]) + gathered + be[...]
        msg = jnp.maximum(msg, 0.0)                                 # edge update [E, L]

        # Mean aggregation: bf16 0/1 sum on the MXU, exact 1/deg scaling on the VPU.
        agg_msg = dot(agg_t, msg.astype(BF16)) * inv_deg            # [N, L] f32

        # Fused node update: [node | agg_msg] @ [Wn_n ; Wn_m]  ([N,2L]x[2L,L]).
        nm = jnp.concatenate([node_b, agg_msg.astype(BF16)], axis=1)  # [N, 2L] bf16
        node = jnp.maximum(dot(nm, w_nm[...]) + bn[...], 0.0)          # [N, L] f32
        edge = msg

    # --- decoder MLP ---
    x = node
    for _ in range(n_dec):
        x = lin_relu(x.astype(BF16), nxt(), nxt())

    # Lane-dense output: decoded node latents; the [L,1] readout runs in the wrapper.
    out_ref[...] = x.astype(out_ref.dtype)


# ----------------------------- model ------------------------------------------

def init_params(key, node_dim, edge_dim, latent, mp_steps=2, decoder_layers=2):
    def dense(k, fan_in, fan_out):
        return (jax.random.normal(k, (fan_in, fan_out), F32)
                / jnp.sqrt(jnp.float32(fan_in)))

    keys = iter(jax.random.split(key, 64))
    params = {
        "node_enc_w": dense(next(keys), node_dim, latent),
        "node_enc_b": jnp.zeros((1, latent), F32),
        "edge_enc_w": dense(next(keys), edge_dim, latent),
        "edge_enc_b": jnp.zeros((1, latent), F32),
        "mp_steps": [],
        "decoder": [],
    }
    for _ in range(mp_steps):
        params["mp_steps"].append((
            dense(next(keys), latent, latent),   # We_edge
            dense(next(keys), latent, latent),   # We_src
            dense(next(keys), latent, latent),   # We_dst
            jnp.zeros((1, latent), F32),
            dense(next(keys), latent, latent),   # Wn_node
            dense(next(keys), latent, latent),   # Wn_msg
            jnp.zeros((1, latent), F32),
        ))
    for _ in range(decoder_layers):
        params["decoder"].append((dense(next(keys), latent, latent),
                                  jnp.zeros((1, latent), F32)))
    params["readout_w"] = dense(next(keys), latent, 1)
    params["readout_b"] = jnp.zeros((1, 1), F32)
    return params


def _cost_estimate(n, e, node_dim, edge_dim, latent, n_mp, n_dec, in_bytes, out_bytes):
    l = latent
    flops = 2 * n * node_dim * l + 2 * e * edge_dim * l              # encoders
    per_step = (2 * n * l * (2 * l)        # node @ [We_s|We_d]
                + 2 * e * (2 * n) * l      # combined src/dst gather
                + 2 * e * l * l            # edge @ We_e
                + 2 * n * e * l            # aggregation
                + 2 * n * (2 * l) * l)     # fused node update
    flops += n_mp * per_step
    flops += n_dec * 2 * n * l * l                                   # decoder MLP
    return pl.CostEstimate(flops=int(flops), transcendentals=0,
                           bytes_accessed=int(in_bytes + out_bytes))


def supervised_mpn_forward(params, node_feat, edge_feat, src_idx, dst_idx,
                           mask_output=None):
    """Mirrors SupervisedMPN.forward: MPN -> decoder MLP -> readout."""
    n, node_dim = node_feat.shape
    e, edge_dim = edge_feat.shape
    latent = params["node_enc_w"].shape[1]
    n_mp = len(params["mp_steps"])
    n_dec = len(params["decoder"])

    # Dense graph operators (exact 0/1 in bf16); mean kept exact via f32 inv_deg.
    src_oh = jax.nn.one_hot(src_idx, n, dtype=BF16)                  # [E, N]
    dst_oh = jax.nn.one_hot(dst_idx, n, dtype=BF16)                  # [E, N]
    srcdst_oh = jnp.concatenate([src_oh, dst_oh], axis=1)            # [E, 2N]
    agg_t = dst_oh.T                                                 # [N, E]
    deg = jnp.zeros((n,), F32).at[dst_idx].add(1.0)
    inv_deg = (1.0 / jnp.maximum(deg, 1.0))[:, None]                 # [N, 1] f32

    inputs = [node_feat.astype(BF16), edge_feat.astype(BF16),
              srcdst_oh, agg_t, inv_deg,
              params["node_enc_w"].astype(BF16), params["node_enc_b"],
              params["edge_enc_w"].astype(BF16), params["edge_enc_b"]]
    for we_e, we_s, we_d, be, wn_n, wn_m, bn in params["mp_steps"]:
        w_sd = jnp.concatenate([we_s, we_d], axis=1).astype(BF16)    # [L, 2L]
        w_nm = jnp.concatenate([wn_n, wn_m], axis=0).astype(BF16)    # [2L, L]
        inputs.extend([we_e.astype(BF16), w_sd, be, w_nm, bn])
    for lw, lb in params["decoder"]:
        inputs.extend([lw.astype(BF16), lb])

    in_bytes = sum(int(a.size) * a.dtype.itemsize for a in inputs)
    out_bytes = n * latent * 4
    vmem_limit = int(min(max(4 * (in_bytes + out_bytes) + (8 << 20), 16 << 20),
                         64 << 20))

    kernel = functools.partial(_fused_mpn_kernel, n_mp=n_mp, n_dec=n_dec)
    decoded = pl.pallas_call(
        kernel,
        grid=(1,),
        out_shape=jax.ShapeDtypeStruct((n, latent), F32),
        in_specs=[_full_spec(a.shape) for a in inputs],
        out_specs=_full_spec((n, latent)),
        compiler_params=pltpu.CompilerParams(
            dimension_semantics=("arbitrary",),
            vmem_limit_bytes=vmem_limit),
        cost_estimate=_cost_estimate(n, e, node_dim, edge_dim, latent,
                                     n_mp, n_dec, in_bytes, out_bytes),
    )(*inputs)

    # Tiny lane-sparse readout ([L,1] matmul) stays in the XLA wrapper so the
    # kernel output remains lane-dense (avoids masked vst.msk / 1-col MXU matmul).
    out = jnp.dot(decoded, params["readout_w"]) + params["readout_b"]   # [N, 1] f32

    if mask_output is not None:
        # Decoder/readout are row-wise, so masking after the fused kernel is
        # equivalent to masking before the decoder (as in the PyTorch module).
        # TODO(synk): boolean masking is a dynamic-shape gather; must run outside jit.
        out = out[mask_output]
    return out


# ----------------------------- pure-JAX reference -------------------------------

def _reference_forward(params, node_feat, edge_feat, src_idx, dst_idx):
    """Same math & casts as the kernel, expressed with plain XLA ops."""
    n = node_feat.shape[0]
    src_oh = jax.nn.one_hot(src_idx, n, dtype=BF16)
    dst_oh = jax.nn.one_hot(dst_idx, n, dtype=BF16)
    deg = jnp.zeros((n,), F32).at[dst_idx].add(1.0)
    inv_deg = (1.0 / jnp.maximum(deg, 1.0))[:, None]

    def mm(a, b):
        return jnp.dot(a.astype(BF16), b.astype(BF16), preferred_element_type=F32)

    node = jnp.maximum(mm(node_feat, params["node_enc_w"]) + params["node_enc_b"], 0.0)
    edge = jnp.maximum(mm(edge_feat, params["edge_enc_w"]) + params["edge_enc_b"], 0.0)
    for we_e, we_s, we_d, be, wn_n, wn_m, bn in params["mp_steps"]:
        src_p = mm(src_oh, mm(node, we_s))
        dst_p = mm(dst_oh, mm(node, we_d))
        msg = jnp.maximum(mm(edge, we_e) + src_p + dst_p + be, 0.0)
        agg_msg = mm(dst_oh.T, msg) * inv_deg
        node = jnp.maximum(mm(node, wn_n) + mm(agg_msg, wn_m) + bn, 0.0)
        edge = msg
    x = node
    for w, b in params["decoder"]:
        x = jnp.maximum(mm(x, w) + b, 0.0)
    return jnp.dot(x, params["readout_w"]) + params["readout_b"]


# ----------------------------- main --------------------------------------------

if __name__ == "__main__":
    key = jax.random.PRNGKey(0)
    k_node, k_edge, k_src, k_dst, k_param = jax.random.split(key, 5)

    N, E = 64, 128             # nodes, edges
    NODE_DIM, EDGE_DIM = 8, 4  # raw graph feature dims
    LATENT = 128               # lane-dense latent dim (fills the 128-lane vreg/MXU)

    node_features = jax.random.normal(k_node, (N, NODE_DIM), F32)
    edge_features = jax.random.normal(k_edge, (E, EDGE_DIM), F32)
    src_idx = jax.random.randint(k_src, (E,), 0, N)
    dst_idx = jax.random.randint(k_dst, (E,), 0, N)

    params = init_params(k_param, NODE_DIM, EDGE_DIM, LATENT,
                         mp_steps=2, decoder_layers=2)

    out = supervised_mpn_forward(params, node_features, edge_features,
                                 src_idx, dst_idx)
    out = jax.block_until_ready(out)
    assert out.shape == (N, 1) and out.dtype == F32

    ref = jax.block_until_ready(
        _reference_forward(params, node_features, edge_features, src_idx, dst_idx))
    assert bool(jnp.allclose(out, ref, rtol=1e-2, atol=1e-2)), "mismatch vs reference"

    print("KERNEL_OK")
</pallas_src>

<mosaic_0001>
module attributes {stable_mosaic.version = 11 : i64} {
  func.func @_fused_mpn_kernel(%arg0: i32, %arg1: memref<64x8xbf16, #tpu.memory_space<vmem>>, %arg2: memref<128x4xbf16, #tpu.memory_space<vmem>>, %arg3: memref<128x128xbf16, #tpu.memory_space<vmem>>, %arg4: memref<64x128xbf16, #tpu.memory_space<vmem>>, %arg5: memref<64x1xf32, #tpu.memory_space<vmem>>, %arg6: memref<8x128xbf16, #tpu.memory_space<vmem>>, %arg7: memref<1x128xf32, #tpu.memory_space<vmem>>, %arg8: memref<4x128xbf16, #tpu.memory_space<vmem>>, %arg9: memref<1x128xf32, #tpu.memory_space<vmem>>, %arg10: memref<128x128xbf16, #tpu.memory_space<vmem>>, %arg11: memref<128x256xbf16, #tpu.memory_space<vmem>>, %arg12: memref<1x128xf32, #tpu.memory_space<vmem>>, %arg13: memref<256x128xbf16, #tpu.memory_space<vmem>>, %arg14: memref<1x128xf32, #tpu.memory_space<vmem>>, %arg15: memref<128x128xbf16, #tpu.memory_space<vmem>>, %arg16: memref<128x256xbf16, #tpu.memory_space<vmem>>, %arg17: memref<1x128xf32, #tpu.memory_space<vmem>>, %arg18: memref<256x128xbf16, #tpu.memory_space<vmem>>, %arg19: memref<1x128xf32, #tpu.memory_space<vmem>>, %arg20: memref<128x128xbf16, #tpu.memory_space<vmem>>, %arg21: memref<1x128xf32, #tpu.memory_space<vmem>>, %arg22: memref<128x128xbf16, #tpu.memory_space<vmem>>, %arg23: memref<1x128xf32, #tpu.memory_space<vmem>>, %arg24: memref<64x128xf32, #tpu.memory_space<vmem>>) attributes {dimension_semantics = [#tpu.dimension_semantics<arbitrary>], iteration_bounds = array<i64: 1>, scalar_prefetch = 0 : i64, scratch_operands = 0 : i64, tpu.core_type = #tpu.core_type<tc>, window_params = [{pipeline_mode = #tpu.pipeline_mode<synchronous>, transform_indices = @transform_0, window_bounds = array<i64: 64, 8>}, {pipeline_mode = #tpu.pipeline_mode<synchronous>, transform_indices = @transform_1, window_bounds = array<i64: 128, 4>}, {pipeline_mode = #tpu.pipeline_mode<synchronous>, transform_indices = @transform_2, window_bounds = array<i64: 128, 128>}, {pipeline_mode = #tpu.pipeline_mode<synchronous>, transform_indices = @transform_3, window_bounds = array<i64: 64, 128>}, {pipeline_mode = #tpu.pipeline_mode<synchronous>, transform_indices = @transform_4, window_bounds = array<i64: 64, 1>}, {pipeline_mode = #tpu.pipeline_mode<synchronous>, transform_indices = @transform_5, window_bounds = array<i64: 8, 128>}, {pipeline_mode = #tpu.pipeline_mode<synchronous>, transform_indices = @transform_6, window_bounds = array<i64: 1, 128>}, {pipeline_mode = #tpu.pipeline_mode<synchronous>, transform_indices = @transform_7, window_bounds = array<i64: 4, 128>}, {pipeline_mode = #tpu.pipeline_mode<synchronous>, transform_indices = @transform_8, window_bounds = array<i64: 1, 128>}, {pipeline_mode = #tpu.pipeline_mode<synchronous>, transform_indices = @transform_9, window_bounds = array<i64: 128, 128>}, {pipeline_mode = #tpu.pipeline_mode<synchronous>, transform_indices = @transform_10, window_bounds = array<i64: 128, 256>}, {pipeline_mode = #tpu.pipeline_mode<synchronous>, transform_indices = @transform_11, window_bounds = array<i64: 1, 128>}, {pipeline_mode = #tpu.pipeline_mode<synchronous>, transform_indices = @transform_12, window_bounds = array<i64: 256, 128>}, {pipeline_mode = #tpu.pipeline_mode<synchronous>, transform_indices = @transform_13, window_bounds = array<i64: 1, 128>}, {pipeline_mode = #tpu.pipeline_mode<synchronous>, transform_indices = @transform_14, window_bounds = array<i64: 128, 128>}, {pipeline_mode = #tpu.pipeline_mode<synchronous>, transform_indices = @transform_15, window_bounds = array<i64: 128, 256>}, {pipeline_mode = #tpu.pipeline_mode<synchronous>, transform_indices = @transform_16, window_bounds = array<i64: 1, 128>}, {pipeline_mode = #tpu.pipeline_mode<synchronous>, transform_indices = @transform_17, window_bounds = array<i64: 256, 128>}, {pipeline_mode = #tpu.pipeline_mode<synchronous>, transform_indices = @transform_18, window_bounds = array<i64: 1, 128>}, {pipeline_mode = #tpu.pipeline_mode<synchronous>, transform_indices = @transform_19, window_bounds = array<i64: 128, 128>}, {pipeline_mode = #tpu.pipeline_mode<synchronous>, transform_indices = @transform_20, window_bounds = array<i64: 1, 128>}, {pipeline_mode = #tpu.pipeline_mode<synchronous>, transform_indices = @transform_21, window_bounds = array<i64: 128, 128>}, {pipeline_mode = #tpu.pipeline_mode<synchronous>, transform_indices = @transform_22, window_bounds = array<i64: 1, 128>}, {pipeline_mode = #tpu.pipeline_mode<synchronous>, transform_indices = @transform_23, window_bounds = array<i64: 64, 128>}]} {
    %c0 = arith.constant 0 : index
    %c0_0 = arith.constant 0 : index
    %0 = vector.load %arg1[%c0, %c0_0] : memref<64x8xbf16, #tpu.memory_space<vmem>>, vector<64x8xbf16>
    %c0_1 = arith.constant 0 : index
    %c0_2 = arith.constant 0 : index
    %1 = vector.load %arg2[%c0_1, %c0_2] : memref<128x4xbf16, #tpu.memory_space<vmem>>, vector<128x4xbf16>
    %c0_3 = arith.constant 0 : index
    %c0_4 = arith.constant 0 : index
    %2 = vector.load %arg3[%c0_3, %c0_4] : memref<128x128xbf16, #tpu.memory_space<vmem>>, vector<128x128xbf16>
    %c0_5 = arith.constant 0 : index
    %c0_6 = arith.constant 0 : index
    %3 = vector.load %arg4[%c0_5, %c0_6] : memref<64x128xbf16, #tpu.memory_space<vmem>>, vector<64x128xbf16>
    %c0_7 = arith.constant 0 : index
    %c0_8 = arith.constant 0 : index
    %4 = vector.load %arg5[%c0_7, %c0_8] : memref<64x1xf32, #tpu.memory_space<vmem>>, vector<64x1xf32>
    %c0_9 = arith.constant 0 : index
    %c0_10 = arith.constant 0 : index
    %5 = vector.load %arg6[%c0_9, %c0_10] : memref<8x128xbf16, #tpu.memory_space<vmem>>, vector<8x128xbf16>
    %cst = arith.constant dense<0.000000e+00> : vector<64x128xf32>
    %6 = tpu.matmul %0, %5, %cst {dimension_numbers = #tpu.dot_dimension_numbers<[1], [0], [0], [1], [0, 0, 1, 1], [], []>} : vector<64x8xbf16>, vector<8x128xbf16>, vector<64x128xf32> -> vector<64x128xf32>
    %c0_11 = arith.constant 0 : index
    %c0_12 = arith.constant 0 : index
    %7 = vector.load %arg7[%c0_11, %c0_12] : memref<1x128xf32, #tpu.memory_space<vmem>>, vector<1x128xf32>
    %8 = vector.broadcast %7 : vector<1x128xf32> to vector<64x128xf32>
    %9 = arith.addf %6, %8 : vector<64x128xf32>
    %cst_13 = arith.constant 0.000000e+00 : f32
    %10 = vector.broadcast %cst_13 : f32 to vector<64x128xf32>
    %11 = arith.maximumf %9, %10 : vector<64x128xf32>
    %c0_14 = arith.constant 0 : index
    %c0_15 = arith.constant 0 : index
    %12 = vector.load %arg8[%c0_14, %c0_15] : memref<4x128xbf16, #tpu.memory_space<vmem>>, vector<4x128xbf16>
    %cst_16 = arith.constant dense<0.000000e+00> : vector<128x128xf32>
    %13 = tpu.matmul %1, %12, %cst_16 {dimension_numbers = #tpu.dot_dimension_numbers<[1], [0], [0], [1], [0, 0, 1, 1], [], []>} : vector<128x4xbf16>, vector<4x128xbf16>, vector<128x128xf32> -> vector<128x128xf32>
    %c0_17 = arith.constant 0 : index
    %c0_18 = arith.constant 0 : index
    %14 = vector.load %arg9[%c0_17, %c0_18] : memref<1x128xf32, #tpu.memory_space<vmem>>, vector<1x128xf32>
    %15 = vector.broadcast %14 : vector<1x128xf32> to vector<128x128xf32>
    %16 = arith.addf %13, %15 : vector<128x128xf32>
    %cst_19 = arith.constant 0.000000e+00 : f32
    %17 = vector.broadcast %cst_19 : f32 to vector<128x128xf32>
    %18 = arith.maximumf %16, %17 : vector<128x128xf32>
    %19 = arith.truncf %11 : vector<64x128xf32> to vector<64x128xbf16>
    %20 = arith.truncf %18 : vector<128x128xf32> to vector<128x128xbf16>
    %c0_20 = arith.constant 0 : index
    %c0_21 = arith.constant 0 : index
    %21 = vector.load %arg11[%c0_20, %c0_21] : memref<128x256xbf16, #tpu.memory_space<vmem>>, vector<128x256xbf16>
    %cst_22 = arith.constant dense<0.000000e+00> : vector<64x256xf32>
    %22 = tpu.matmul %19, %21, %cst_22 {dimension_numbers = #tpu.dot_dimension_numbers<[1], [0], [0], [1], [0, 0, 1, 1], [], []>} : vector<64x128xbf16>, vector<128x256xbf16>, vector<64x256xf32> -> vector<64x256xf32>
    %23 = vector.extract_strided_slice %22 {offsets = [0, 0], sizes = [64, 128], strides = [1, 1]} : vector<64x256xf32> to vector<64x128xf32>
    %24 = vector.extract_strided_slice %22 {offsets = [0, 128], sizes = [64, 128], strides = [1, 1]} : vector<64x256xf32> to vector<64x128xf32>
    %25 = tpu.concatenate %23, %24 in 0 : vector<64x128xf32>, vector<64x128xf32> -> vector<128x128xf32>
    %26 = arith.truncf %25 : vector<128x128xf32> to vector<128x128xbf16>
    %cst_23 = arith.constant dense<0.000000e+00> : vector<128x128xf32>
    %27 = tpu.matmul %2, %26, %cst_23 {dimension_numbers = #tpu.dot_dimension_numbers<[1], [0], [0], [1], [0, 0, 1, 1], [], []>} : vector<128x128xbf16>, vector<128x128xbf16>, vector<128x128xf32> -> vector<128x128xf32>
    %c0_24 = arith.constant 0 : index
    %c0_25 = arith.constant 0 : index
    %28 = vector.load %arg10[%c0_24, %c0_25] : memref<128x128xbf16, #tpu.memory_space<vmem>>, vector<128x128xbf16>
    %cst_26 = arith.constant dense<0.000000e+00> : vector<128x128xf32>
    %29 = tpu.matmul %20, %28, %cst_26 {dimension_numbers = #tpu.dot_dimension_numbers<[1], [0], [0], [1], [0, 0, 1, 1], [], []>} : vector<128x128xbf16>, vector<128x128xbf16>, vector<128x128xf32> -> vector<128x128xf32>
    %30 = arith.addf %29, %27 : vector<128x128xf32>
    %c0_27 = arith.constant 0 : index
    %c0_28 = arith.constant 0 : index
    %31 = vector.load %arg12[%c0_27, %c0_28] : memref<1x128xf32, #tpu.memory_space<vmem>>, vector<1x128xf32>
    %32 = vector.broadcast %31 : vector<1x128xf32> to vector<128x128xf32>
    %33 = arith.addf %30, %32 : vector<128x128xf32>
    %cst_29 = arith.constant 0.000000e+00 : f32
    %34 = vector.broadcast %cst_29 : f32 to vector<128x128xf32>
    %35 = arith.maximumf %33, %34 : vector<128x128xf32>
    %36 = arith.truncf %35 : vector<128x128xf32> to vector<128x128xbf16>
    %cst_30 = arith.constant dense<0.000000e+00> : vector<64x128xf32>
    %37 = tpu.matmul %3, %36, %cst_30 {dimension_numbers = #tpu.dot_dimension_numbers<[1], [0], [0], [1], [0, 0, 1, 1], [], []>} : vector<64x128xbf16>, vector<128x128xbf16>, vector<64x128xf32> -> vector<64x128xf32>
    %38 = vector.broadcast %4 : vector<64x1xf32> to vector<64x128xf32>
    %39 = arith.mulf %37, %38 : vector<64x128xf32>
    %40 = arith.truncf %39 : vector<64x128xf32> to vector<64x128xbf16>
    %41 = tpu.concatenate %19, %40 in 1 : vector<64x128xbf16>, vector<64x128xbf16> -> vector<64x256xbf16>
    %c0_31 = arith.constant 0 : index
    %c0_32 = arith.constant 0 : index
    %42 = vector.load %arg13[%c0_31, %c0_32] : memref<256x128xbf16, #tpu.memory_space<vmem>>, vector<256x128xbf16>
    %cst_33 = arith.constant dense<0.000000e+00> : vector<64x128xf32>
    %43 = tpu.matmul %41, %42, %cst_33 {dimension_numbers = #tpu.dot_dimension_numbers<[1], [0], [0], [1], [0, 0, 1, 1], [], []>} : vector<64x256xbf16>, vector<256x128xbf16>, vector<64x128xf32> -> vector<64x128xf32>
    %c0_34 = arith.constant 0 : index
    %c0_35 = arith.constant 0 : index
    %44 = vector.load %arg14[%c0_34, %c0_35] : memref<1x128xf32, #tpu.memory_space<vmem>>, vector<1x128xf32>
    %45 = vector.broadcast %44 : vector<1x128xf32> to vector<64x128xf32>
    %46 = arith.addf %43, %45 : vector<64x128xf32>
    %cst_36 = arith.constant 0.000000e+00 : f32
    %47 = vector.broadcast %cst_36 : f32 to vector<64x128xf32>
    %48 = arith.maximumf %46, %47 : vector<64x128xf32>
    %49 = arith.truncf %48 : vector<64x128xf32> to vector<64x128xbf16>
    %50 = arith.truncf %35 : vector<128x128xf32> to vector<128x128xbf16>
    %c0_37 = arith.constant 0 : index
    %c0_38 = arith.constant 0 : index
    %51 = vector.load %arg16[%c0_37, %c0_38] : memref<128x256xbf16, #tpu.memory_space<vmem>>, vector<128x256xbf16>
    %cst_39 = arith.constant dense<0.000000e+00> : vector<64x256xf32>
    %52 = tpu.matmul %49, %51, %cst_39 {dimension_numbers = #tpu.dot_dimension_numbers<[1], [0], [0], [1], [0, 0, 1, 1], [], []>} : vector<64x128xbf16>, vector<128x256xbf16>, vector<64x256xf32> -> vector<64x256xf32>
    %53 = vector.extract_strided_slice %52 {offsets = [0, 0], sizes = [64, 128], strides = [1, 1]} : vector<64x256xf32> to vector<64x128xf32>
    %54 = vector.extract_strided_slice %52 {offsets = [0, 128], sizes = [64, 128], strides = [1, 1]} : vector<64x256xf32> to vector<64x128xf32>
    %55 = tpu.concatenate %53, %54 in 0 : vector<64x128xf32>, vector<64x128xf32> -> vector<128x128xf32>
    %56 = arith.truncf %55 : vector<128x128xf32> to vector<128x128xbf16>
    %cst_40 = arith.constant dense<0.000000e+00> : vector<128x128xf32>
    %57 = tpu.matmul %2, %56, %cst_40 {dimension_numbers = #tpu.dot_dimension_numbers<[1], [0], [0], [1], [0, 0, 1, 1], [], []>} : vector<128x128xbf16>, vector<128x128xbf16>, vector<128x128xf32> -> vector<128x128xf32>
    %c0_41 = arith.constant 0 : index
    %c0_42 = arith.constant 0 : index
    %58 = vector.load %arg15[%c0_41, %c0_42] : memref<128x128xbf16, #tpu.memory_space<vmem>>, vector<128x128xbf16>
    %cst_43 = arith.constant dense<0.000000e+00> : vector<128x128xf32>
    %59 = tpu.matmul %50, %58, %cst_43 {dimension_numbers = #tpu.dot_dimension_numbers<[1], [0], [0], [1], [0, 0, 1, 1], [], []>} : vector<128x128xbf16>, vector<128x128xbf16>, vector<128x128xf32> -> vector<128x128xf32>
    %60 = arith.addf %59, %57 : vector<128x128xf32>
    %c0_44 = arith.constant 0 : index
    %c0_45 = arith.constant 0 : index
    %61 = vector.load %arg17[%c0_44, %c0_45] : memref<1x128xf32, #tpu.memory_space<vmem>>, vector<1x128xf32>
    %62 = vector.broadcast %61 : vector<1x128xf32> to vector<128x128xf32>
    %63 = arith.addf %60, %62 : vector<128x128xf32>
    %cst_46 = arith.constant 0.000000e+00 : f32
    %64 = vector.broadcast %cst_46 : f32 to vector<128x128xf32>
    %65 = arith.maximumf %63, %64 : vector<128x128xf32>
    %66 = arith.truncf %65 : vector<128x128xf32> to vector<128x128xbf16>
    %cst_47 = arith.constant dense<0.000000e+00> : vector<64x128xf32>
    %67 = tpu.matmul %3, %66, %cst_47 {dimension_numbers = #tpu.dot_dimension_numbers<[1], [0], [0], [1], [0, 0, 1, 1], [], []>} : vector<64x128xbf16>, vector<128x128xbf16>, vector<64x128xf32> -> vector<64x128xf32>
    %68 = vector.broadcast %4 : vector<64x1xf32> to vector<64x128xf32>
    %69 = arith.mulf %67, %68 : vector<64x128xf32>
    %70 = arith.truncf %69 : vector<64x128xf32> to vector<64x128xbf16>
    %71 = tpu.concatenate %49, %70 in 1 : vector<64x128xbf16>, vector<64x128xbf16> -> vector<64x256xbf16>
    %c0_48 = arith.constant 0 : index
    %c0_49 = arith.constant 0 : index
    %72 = vector.load %arg18[%c0_48, %c0_49] : memref<256x128xbf16, #tpu.memory_space<vmem>>, vector<256x128xbf16>
    %cst_50 = arith.constant dense<0.000000e+00> : vector<64x128xf32>
    %73 = tpu.matmul %71, %72, %cst_50 {dimension_numbers = #tpu.dot_dimension_numbers<[1], [0], [0], [1], [0, 0, 1, 1], [], []>} : vector<64x256xbf16>, vector<256x128xbf16>, vector<64x128xf32> -> vector<64x128xf32>
    %c0_51 = arith.constant 0 : index
    %c0_52 = arith.constant 0 : index
    %74 = vector.load %arg19[%c0_51, %c0_52] : memref<1x128xf32, #tpu.memory_space<vmem>>, vector<1x128xf32>
    %75 = vector.broadcast %74 : vector<1x128xf32> to vector<64x128xf32>
    %76 = arith.addf %73, %75 : vector<64x128xf32>
    %cst_53 = arith.constant 0.000000e+00 : f32
    %77 = vector.broadcast %cst_53 : f32 to vector<64x128xf32>
    %78 = arith.maximumf %76, %77 : vector<64x128xf32>
    %79 = arith.truncf %78 : vector<64x128xf32> to vector<64x128xbf16>
    %c0_54 = arith.constant 0 : index
    %c0_55 = arith.constant 0 : index
    %80 = vector.load %arg20[%c0_54, %c0_55] : memref<128x128xbf16, #tpu.memory_space<vmem>>, vector<128x128xbf16>
    %cst_56 = arith.constant dense<0.000000e+00> : vector<64x128xf32>
    %81 = tpu.matmul %79, %80, %cst_56 {dimension_numbers = #tpu.dot_dimension_numbers<[1], [0], [0], [1], [0, 0, 1, 1], [], []>} : vector<64x128xbf16>, vector<128x128xbf16>, vector<64x128xf32> -> vector<64x128xf32>
    %c0_57 = arith.constant 0 : index
    %c0_58 = arith.constant 0 : index
    %82 = vector.load %arg21[%c0_57, %c0_58] : memref<1x128xf32, #tpu.memory_space<vmem>>, vector<1x128xf32>
    %83 = vector.broadcast %82 : vector<1x128xf32> to vector<64x128xf32>
    %84 = arith.addf %81, %83 : vector<64x128xf32>
    %cst_59 = arith.constant 0.000000e+00 : f32
    %85 = vector.broadcast %cst_59 : f32 to vector<64x128xf32>
    %86 = arith.maximumf %84, %85 : vector<64x128xf32>
    %87 = arith.truncf %86 : vector<64x128xf32> to vector<64x128xbf16>
    %c0_60 = arith.constant 0 : index
    %c0_61 = arith.constant 0 : index
    %88 = vector.load %arg22[%c0_60, %c0_61] : memref<128x128xbf16, #tpu.memory_space<vmem>>, vector<128x128xbf16>
    %cst_62 = arith.constant dense<0.000000e+00> : vector<64x128xf32>
    %89 = tpu.matmul %87, %88, %cst_62 {dimension_numbers = #tpu.dot_dimension_numbers<[1], [0], [0], [1], [0, 0, 1, 1], [], []>} : vector<64x128xbf16>, vector<128x128xbf16>, vector<64x128xf32> -> vector<64x128xf32>
    %c0_63 = arith.constant 0 : index
    %c0_64 = arith.constant 0 : index
    %90 = vector.load %arg23[%c0_63, %c0_64] : memref<1x128xf32, #tpu.memory_space<vmem>>, vector<1x128xf32>
    %91 = vector.broadcast %90 : vector<1x128xf32> to vector<64x128xf32>
    %92 = arith.addf %89, %91 : vector<64x128xf32>
    %cst_65 = arith.constant 0.000000e+00 : f32
    %93 = vector.broadcast %cst_65 : f32 to vector<64x128xf32>
    %94 = arith.maximumf %92, %93 : vector<64x128xf32>
    %c0_66 = arith.constant 0 : index
    %c0_67 = arith.constant 0 : index
    %95 = vector.load %arg24[%c0_66, %c0_67] : memref<64x128xf32, #tpu.memory_space<vmem>>, vector<64x128xf32>
    tpu.vector_store %arg24[%c0_66, %c0_67], %94 {strides = array<i32>} : memref<64x128xf32, #tpu.memory_space<vmem>>, vector<64x128xf32>,
    return
  }
  func.func @transform_0(%arg0: i32) -> (i32, i32) {
    %c0_i32 = arith.constant 0 : i32
    %c0_i32_0 = arith.constant 0 : i32
    %c0_i32_1 = arith.constant 0 : i32
    return %c0_i32, %c0_i32_0 : i32, i32
  }
  func.func @transform_1(%arg0: i32) -> (i32, i32) {
    %c0_i32 = arith.constant 0 : i32
    %c0_i32_0 = arith.constant 0 : i32
    %c0_i32_1 = arith.constant 0 : i32
    return %c0_i32, %c0_i32_0 : i32, i32
  }
  func.func @transform_2(%arg0: i32) -> (i32, i32) {
    %c0_i32 = arith.constant 0 : i32
    %c0_i32_0 = arith.constant 0 : i32
    %c0_i32_1 = arith.constant 0 : i32
    return %c0_i32, %c0_i32_0 : i32, i32
  }
  func.func @transform_3(%arg0: i32) -> (i32, i32) {
    %c0_i32 = arith.constant 0 : i32
    %c0_i32_0 = arith.constant 0 : i32
    %c0_i32_1 = arith.constant 0 : i32
    return %c0_i32, %c0_i32_0 : i32, i32
  }
  func.func @transform_4(%arg0: i32) -> (i32, i32) {
    %c0_i32 = arith.constant 0 : i32
    %c0_i32_0 = arith.constant 0 : i32
    %c0_i32_1 = arith.constant 0 : i32
    return %c0_i32, %c0_i32_0 : i32, i32
  }
  func.func @transform_5(%arg0: i32) -> (i32, i32) {
    %c0_i32 = arith.constant 0 : i32
    %c0_i32_0 = arith.constant 0 : i32
    %c0_i32_1 = arith.constant 0 : i32
    return %c0_i32, %c0_i32_0 : i32, i32
  }
  func.func @transform_6(%arg0: i32) -> (i32, i32) {
    %c0_i32 = arith.constant 0 : i32
    %c0_i32_0 = arith.constant 0 : i32
    %c0_i32_1 = arith.constant 0 : i32
    return %c0_i32, %c0_i32_0 : i32, i32
  }
  func.func @transform_7(%arg0: i32) -> (i32, i32) {
    %c0_i32 = arith.constant 0 : i32
    %c0_i32_0 = arith.constant 0 : i32
    %c0_i32_1 = arith.constant 0 : i32
    return %c0_i32, %c0_i32_0 : i32, i32
  }
  func.func @transform_8(%arg0: i32) -> (i32, i32) {
    %c0_i32 = arith.constant 0 : i32
    %c0_i32_0 = arith.constant 0 : i32
    %c0_i32_1 = arith.constant 0 : i32
    return %c0_i32, %c0_i32_0 : i32, i32
  }
  func.func @transform_9(%arg0: i32) -> (i32, i32) {
    %c0_i32 = arith.constant 0 : i32
    %c0_i32_0 = arith.constant 0 : i32
    %c0_i32_1 = arith.constant 0 : i32
    return %c0_i32, %c0_i32_0 : i32, i32
  }
  func.func @transform_10(%arg0: i32) -> (i32, i32) {
    %c0_i32 = arith.constant 0 : i32
    %c0_i32_0 = arith.constant 0 : i32
    %c0_i32_1 = arith.constant 0 : i32
    return %c0_i32, %c0_i32_0 : i32, i32
  }
  func.func @transform_11(%arg0: i32) -> (i32, i32) {
    %c0_i32 = arith.constant 0 : i32
    %c0_i32_0 = arith.constant 0 : i32
    %c0_i32_1 = arith.constant 0 : i32
    return %c0_i32, %c0_i32_0 : i32, i32
  }
  func.func @transform_12(%arg0: i32) -> (i32, i32) {
    %c0_i32 = arith.constant 0 : i32
    %c0_i32_0 = arith.constant 0 : i32
    %c0_i32_1 = arith.constant 0 : i32
    return %c0_i32, %c0_i32_0 : i32, i32
  }
  func.func @transform_13(%arg0: i32) -> (i32, i32) {
    %c0_i32 = arith.constant 0 : i32
    %c0_i32_0 = arith.constant 0 : i32
    %c0_i32_1 = arith.constant 0 : i32
    return %c0_i32, %c0_i32_0 : i32, i32
  }
  func.func @transform_14(%arg0: i32) -> (i32, i32) {
    %c0_i32 = arith.constant 0 : i32
    %c0_i32_0 = arith.constant 0 : i32
    %c0_i32_1 = arith.constant 0 : i32
    return %c0_i32, %c0_i32_0 : i32, i32
  }
  func.func @transform_15(%arg0: i32) -> (i32, i32) {
    %c0_i32 = arith.constant 0 : i32
    %c0_i32_0 = arith.constant 0 : i32
    %c0_i32_1 = arith.constant 0 : i32
    return %c0_i32, %c0_i32_0 : i32, i32
  }
  func.func @transform_16(%arg0: i32) -> (i32, i32) {
    %c0_i32 = arith.constant 0 : i32
    %c0_i32_0 = arith.constant 0 : i32
    %c0_i32_1 = arith.constant 0 : i32
    return %c0_i32, %c0_i32_0 : i32, i32
  }
  func.func @transform_17(%arg0: i32) -> (i32, i32) {
    %c0_i32 = arith.constant 0 : i32
    %c0_i32_0 = arith.constant 0 : i32
    %c0_i32_1 = arith.constant 0 : i32
    return %c0_i32, %c0_i32_0 : i32, i32
  }
  func.func @transform_18(%arg0: i32) -> (i32, i32) {
    %c0_i32 = arith.constant 0 : i32
    %c0_i32_0 = arith.constant 0 : i32
    %c0_i32_1 = arith.constant 0 : i32
    return %c0_i32, %c0_i32_0 : i32, i32
  }
  func.func @transform_19(%arg0: i32) -> (i32, i32) {
    %c0_i32 = arith.constant 0 : i32
    %c0_i32_0 = arith.constant 0 : i32
    %c0_i32_1 = arith.constant 0 : i32
    return %c0_i32, %c0_i32_0 : i32, i32
  }
  func.func @transform_20(%arg0: i32) -> (i32, i32) {
    %c0_i32 = arith.constant 0 : i32
    %c0_i32_0 = arith.constant 0 : i32
    %c0_i32_1 = arith.constant 0 : i32
    return %c0_i32, %c0_i32_0 : i32, i32
  }
  func.func @transform_21(%arg0: i32) -> (i32, i32) {
    %c0_i32 = arith.constant 0 : i32
    %c0_i32_0 = arith.constant 0 : i32
    %c0_i32_1 = arith.constant 0 : i32
    return %c0_i32, %c0_i32_0 : i32, i32
  }
  func.func @transform_22(%arg0: i32) -> (i32, i32) {
    %c0_i32 = arith.constant 0 : i32
    %c0_i32_0 = arith.constant 0 : i32
    %c0_i32_1 = arith.constant 0 : i32
    return %c0_i32, %c0_i32_0 : i32, i32
  }
  func.func @transform_23(%arg0: i32) -> (i32, i32) {
    %c0_i32 = arith.constant 0 : i32
    %c0_i32_0 = arith.constant 0 : i32
    %c0_i32_1 = arith.constant 0 : i32
    return %c0_i32, %c0_i32_0 : i32, i32
  }
}

</mosaic_0001>

<llo_original>
// kernel: tpu_custom_call.1
$region0: #{tpu_custom_call.1}
  #allocation0 [shape = 'u32[]', space=smem, size = 0x4, offset = 0x4, fixed_abs, tag = 'smem constant byte address 0x4 - core index']
  #allocation1 [shape = 'u32[144,128]{1,0:T(1,128)}', space=vmem, size = 0x12000, scoped, tag = 'internal scratch']
  %s0 = inlined_call_operand.vmem [shape: bf16[64,8], index: 0, kind: input, shape index: {}]
  %s1 = inlined_call_operand.vmem [shape: bf16[128,4], index: 1, kind: input, shape index: {}]
  %s2 = inlined_call_operand.vmem [shape: bf16[128,128], index: 2, kind: input, shape index: {}]
  %s3 = inlined_call_operand.hbm [shape: bf16[64,128], index: 3, kind: input, shape index: {}]
  %s4 = inlined_call_operand.vmem [shape: f32[64,1], index: 4, kind: input, shape index: {}]
  %s5 = inlined_call_operand.vmem [shape: bf16[8,128], index: 5, kind: input, shape index: {}]
  %s6 = inlined_call_operand.vmem [shape: f32[1,128], index: 6, kind: input, shape index: {}]
  %s7 = inlined_call_operand.vmem [shape: bf16[4,128], index: 7, kind: input, shape index: {}]
  %s8 = inlined_call_operand.vmem [shape: f32[1,128], index: 8, kind: input, shape index: {}]
  %s9 = inlined_call_operand.hbm [shape: bf16[128,128], index: 9, kind: input, shape index: {}]
  %s10 = inlined_call_operand.vmem [shape: bf16[128,256], index: 10, kind: input, shape index: {}]
  %s11 = inlined_call_operand.vmem [shape: f32[1,128], index: 11, kind: input, shape index: {}]
  %s12 = inlined_call_operand.hbm [shape: bf16[256,128], index: 12, kind: input, shape index: {}]
  %s13 = inlined_call_operand.vmem [shape: f32[1,128], index: 13, kind: input, shape index: {}]
  %s14 = inlined_call_operand.hbm [shape: bf16[128,128], index: 14, kind: input, shape index: {}]
  %s15 = inlined_call_operand.hbm [shape: bf16[128,256], index: 15, kind: input, shape index: {}]
  %s16 = inlined_call_operand.vmem [shape: f32[1,128], index: 16, kind: input, shape index: {}]
  %s17 = inlined_call_operand.hbm [shape: bf16[256,128], index: 17, kind: input, shape index: {}]
  %s18 = inlined_call_operand.vmem [shape: f32[1,128], index: 18, kind: input, shape index: {}]
  %s19 = inlined_call_operand.hbm [shape: bf16[128,128], index: 19, kind: input, shape index: {}]
  %s20 = inlined_call_operand.vmem [shape: f32[1,128], index: 20, kind: input, shape index: {}]
  %s21 = inlined_call_operand.hbm [shape: bf16[128,128], index: 21, kind: input, shape index: {}]
  %s22 = inlined_call_operand.vmem [shape: f32[1,128], index: 22, kind: input, shape index: {}]
  %s23 = inlined_call_operand.hbm [shape: f32[64,128], index: 23, kind: output, shape index: {}]
  %s24 = sld [smem:[#allocation0]]
  $region134: #{tpu_custom_call.1} parent=0
    _
  %s26 = ssub.s32 1, %s24
  %s27 = scalar_select 0, %s26, %s24
  $region1: #{tpu_custom_call.1} parent=0
    #allocation2 [shape = 'u8[16384]{0}', space=vmem, size = 0x4000, scoped, tag = 'input window, operand 3, single buffered']
    #allocation3 [shape = 's32[1]{0}', space=sflag, size = 0x4, scoped, tag = 'scoped memory for tpu_custom_call.1']
    #allocation4 [shape = 's32[1]{0}', space=sflag, size = 0x4, scoped, tag = 'scoped memory for tpu_custom_call.1']
    #allocation5 [shape = 'u8[32768]{0}', space=vmem, size = 0x8000, scoped, tag = 'input window, operand 9, single buffered']
    #allocation6 [shape = 's32[1]{0}', space=sflag, size = 0x4, scoped, tag = 'scoped memory for tpu_custom_call.1']
    #allocation7 [shape = 'u8[65536]{0}', space=vmem, size = 0x10000, scoped, tag = 'input window, operand 12, single buffered']
    #allocation8 [shape = 'u8[32768]{0}', space=vmem, size = 0x8000, scoped, tag = 'input window, operand 14, single buffered']
    #allocation9 [shape = 's32[1]{0}', space=sflag, size = 0x4, scoped, tag = 'scoped memory for tpu_custom_call.1']
    #allocation10 [shape = 'u8[65536]{0}', space=vmem, size = 0x10000, scoped, tag = 'input window, operand 15, single buffered']
    #allocation11 [shape = 'u8[65536]{0}', space=vmem, size = 0x10000, scoped, tag = 'input window, operand 17, single buffered']
    #allocation12 [shape = 's32[1]{0}', space=sflag, size = 0x4, scoped, tag = 'scoped memory for tpu_custom_call.1']
    #allocation13 [shape = 'u8[32768]{0}', space=vmem, size = 0x8000, scoped, tag = 'input window, operand 19, single buffered']
    #allocation14 [shape = 'u8[32768]{0}', space=vmem, size = 0x8000, scoped, tag = 'input window, operand 21, single buffered']
    #allocation15 [shape = 's32[1]{0}', space=sflag, size = 0x4, scoped, tag = 'scoped memory for tpu_custom_call.1']
    #allocation16 [shape = 'u8[32768]{0}', space=vmem, size = 0x8000, scoped, tag = 'output window, operand 0, single buffered']
    %28 = vsyncpa [#allocation3], 0
    %29 = vsyncpa [#allocation6], 0
    %30 = vsyncpa [#allocation9], 0
    %31 = vsyncpa [#allocation12], 0
    %32 = vsyncpa [#allocation15], 0
    %33 = vsyncpa [#allocation4], 0
    // Predicated region
    $region2: #{tpu_custom_call.1} parent=1 // pred_check
      _
    $region3: #{tpu_custom_call.1} parent=1 // pred_check_branch
      %35 = sbr.rel (0) target = $region5
    $region4: #{tpu_custom_call.1} parent=1 // pred_region
      _
    $region5: #{tpu_custom_call.1} parent=1 // pred_fallthru
      _
    // Predicated region
    $region6: #{tpu_custom_call.1} parent=1 // pred_check
      _
    $region7: #{tpu_custom_call.1} parent=1 // pred_check_branch
      %37 = sbr.rel (0) target = $region9
    $region8: #{tpu_custom_call.1} parent=1 // pred_region
      _
    $region9: #{tpu_custom_call.1} parent=1 // pred_fallthru
      _
    // Predicated region
    $region10: #{tpu_custom_call.1} parent=1 // pred_check
      _
    $region11: #{tpu_custom_call.1} parent=1 // pred_check_branch
      %39 = sbr.rel (0) target = $region13
    $region12: #{tpu_custom_call.1} parent=1 // pred_region
      _
    $region13: #{tpu_custom_call.1} parent=1 // pred_fallthru
      _
    // Predicated region
    $region14: #{tpu_custom_call.1} parent=1 // pred_check
      _
    $region15: #{tpu_custom_call.1} parent=1 // pred_check_branch
      %41 = sbr.rel (0) target = $region17
    $region16: #{tpu_custom_call.1} parent=1 // pred_region
      %s43 = ssub.s32 512, 512
      %44 = vsyncadd [#allocation3], %s43
      %s45 = sshll.u32 [#allocation2], 4
      %s46 = int_to_ptr.vmem [resolvable:$true] %s45
      %51 = dma.hbm_to_vmem [thread:$0]  %s3, 512, %s46, [#allocation3], 64, 64, 4
    $region17: #{tpu_custom_call.1} parent=1 // pred_fallthru
      _
    // Predicated region
    $region18: #{tpu_custom_call.1} parent=1 // pred_check
      _
    $region19: #{tpu_custom_call.1} parent=1 // pred_check_branch
      %53 = sbr.rel (0) target = $region21
    $region20: #{tpu_custom_call.1} parent=1 // pred_region
      _
    $region21: #{tpu_custom_call.1} parent=1 // pred_fallthru
      _
    // Predicated region
    $region22: #{tpu_custom_call.1} parent=1 // pred_check
      _
    $region23: #{tpu_custom_call.1} parent=1 // pred_check_branch
      %55 = sbr.rel (0) target = $region25
    $region24: #{tpu_custom_call.1} parent=1 // pred_region
      _
    $region25: #{tpu_custom_call.1} parent=1 // pred_fallthru
      _
    // Predicated region
    $region26: #{tpu_custom_call.1} parent=1 // pred_check
      _
    $region27: #{tpu_custom_call.1} parent=1 // pred_check_branch
      %57 = sbr.rel (0) target = $region29
    $region28: #{tpu_custom_call.1} parent=1 // pred_region
      _
    $region29: #{tpu_custom_call.1} parent=1 // pred_fallthru
      _
    // Predicated region
    $region30: #{tpu_custom_call.1} parent=1 // pred_check
      _
    $region31: #{tpu_custom_call.1} parent=1 // pred_check_branch
      %59 = sbr.rel (0) target = $region33
    $region32: #{tpu_custom_call.1} parent=1 // pred_region
      _
    $region33: #{tpu_custom_call.1} parent=1 // pred_fallthru
      _
    // Predicated region
    $region34: #{tpu_custom_call.1} parent=1 // pred_check
      _
    $region35: #{tpu_custom_call.1} parent=1 // pred_check_branch
      %61 = sbr.rel (0) target = $region37
    $region36: #{tpu_custom_call.1} parent=1 // pred_region
      _
    $region37: #{tpu_custom_call.1} parent=1 // pred_fallthru
      _
    // Predicated region
    $region38: #{tpu_custom_call.1} parent=1 // pred_check
      _
    $region39: #{tpu_custom_call.1} parent=1 // pred_check_branch
      %63 = sbr.rel (0) target = $region41
    $region40: #{tpu_custom_call.1} parent=1 // pred_region
      %s65 = ssub.s32 1024, 1024
      %66 = vsyncadd [#allocation6], %s65
      %s67 = sshll.u32 [#allocation5], 4
      %s68 = int_to_ptr.vmem [resolvable:$true] %s67
      %73 = dma.hbm_to_vmem [thread:$0]  %s9, 1024, %s68, [#allocation6], 64, 64, 4
    $region41: #{tpu_custom_call.1} parent=1 // pred_fallthru
      _
    // Predicated region
    $region42: #{tpu_custom_call.1} parent=1 // pred_check
      _
    $region43: #{tpu_custom_call.1} parent=1 // pred_check_branch
      %75 = sbr.rel (0) target = $region45
    $region44: #{tpu_custom_call.1} parent=1 // pred_region
      _
    $region45: #{tpu_custom_call.1} parent=1 // pred_fallthru
      _
    // Predicated region
    $region46: #{tpu_custom_call.1} parent=1 // pred_check
      _
    $region47: #{tpu_custom_call.1} parent=1 // pred_check_branch
      %77 = sbr.rel (0) target = $region49
    $region48: #{tpu_custom_call.1} parent=1 // pred_region
      _
    $region49: #{tpu_custom_call.1} parent=1 // pred_fallthru
      _
    // Predicated region
    $region50: #{tpu_custom_call.1} parent=1 // pred_check
      _
    $region51: #{tpu_custom_call.1} parent=1 // pred_check_branch
      %79 = sbr.rel (0) target = $region53
    $region52: #{tpu_custom_call.1} parent=1 // pred_region
      %s81 = ssub.s32 2048, 2048
      %82 = vsyncadd [#allocation6], %s81
      %s83 = sshll.u32 [#allocation7], 4
      %s84 = int_to_ptr.vmem [resolvable:$true] %s83
      %89 = dma.hbm_to_vmem [thread:$0]  %s12, 2048, %s84, [#allocation6], 64, 64, 4
    $region53: #{tpu_custom_call.1} parent=1 // pred_fallthru
      _
    // Predicated region
    $region54: #{tpu_custom_call.1} parent=1 // pred_check
      _
    $region55: #{tpu_custom_call.1} parent=1 // pred_check_branch
      %91 = sbr.rel (0) target = $region57
    $region56: #{tpu_custom_call.1} parent=1 // pred_region
      _
    $region57: #{tpu_custom_call.1} parent=1 // pred_fallthru
      _
    // Predicated region
    $region58: #{tpu_custom_call.1} parent=1 // pred_check
      _
    $region59: #{tpu_custom_call.1} parent=1 // pred_check_branch
      %93 = sbr.rel (0) target = $region61
    $region60: #{tpu_custom_call.1} parent=1 // pred_region
      %s95 = ssub.s32 1024, 1024
      %96 = vsyncadd [#allocation9], %s95
      %s97 = sshll.u32 [#allocation8], 4
      %s98 = int_to_ptr.vmem [resolvable:$true] %s97
      %103 = dma.hbm_to_vmem [thread:$0]  %s14, 1024, %s98, [#allocation9], 64, 64, 4
    $region61: #{tpu_custom_call.1} parent=1 // pred_fallthru
      _
    // Predicated region
    $region62: #{tpu_custom_call.1} parent=1 // pred_check
      _
    $region63: #{tpu_custom_call.1} parent=1 // pred_check_branch
      %105 = sbr.rel (0) target = $region65
    $region64: #{tpu_custom_call.1} parent=1 // pred_region
      %s107 = ssub.s32 2048, 2048
      %108 = vsyncadd [#allocation9], %s107
      %s109 = sshll.u32 [#allocation10], 4
      %s110 = int_to_ptr.vmem [resolvable:$true] %s109
      %115 = dma.hbm_to_vmem [thread:$0]  %s15, 2048, %s110, [#allocation9], 128, 128, 8
    $region65: #{tpu_custom_call.1} parent=1 // pred_fallthru
      _
    // Predicated region
    $region66: #{tpu_custom_call.1} parent=1 // pred_check
      _
    $region67: #{tpu_custom_call.1} parent=1 // pred_check_branch
      %117 = sbr.rel (0) target = $region69
    $region68: #{tpu_custom_call.1} parent=1 // pred_region
      _
    $region69: #{tpu_custom_call.1} parent=1 // pred_fallthru
      _
    // Predicated region
    $region70: #{tpu_custom_call.1} parent=1 // pred_check
      _
    $region71: #{tpu_custom_call.1} parent=1 // pred_check_branch
      %119 = sbr.rel (0) target = $region73
    $region72: #{tpu_custom_call.1} parent=1 // pred_region
      %s121 = ssub.s32 2048, 2048
      %122 = vsyncadd [#allocation12], %s121
      %s123 = sshll.u32 [#allocation11], 4
      %s124 = int_to_ptr.vmem [resolvable:$true] %s123
      %129 = dma.hbm_to_vmem [thread:$0]  %s17, 2048, %s124, [#allocation12], 64, 64, 4
    $region73: #{tpu_custom_call.1} parent=1 // pred_fallthru
      _
    // Predicated region
    $region74: #{tpu_custom_call.1} parent=1 // pred_check
      _
    $region75: #{tpu_custom_call.1} parent=1 // pred_check_branch
      %131 = sbr.rel (0) target = $region77
    $region76: #{tpu_custom_call.1} parent=1 // pred_region
      _
    $region77: #{tpu_custom_call.1} parent=1 // pred_fallthru
      _
    // Predicated region
    $region78: #{tpu_custom_call.1} parent=1 // pred_check
      _
    $region79: #{tpu_custom_call.1} parent=1 // pred_check_branch
      %133 = sbr.rel (0) target = $region81
    $region80: #{tpu_custom_call.1} parent=1 // pred_region
      %s135 = ssub.s32 1024, 1024
      %136 = vsyncadd [#allocation12], %s135
      %s137 = sshll.u32 [#allocation13], 4
      %s138 = int_to_ptr.vmem [resolvable:$true] %s137
      %143 = dma.hbm_to_vmem [thread:$0]  %s19, 1024, %s138, [#allocation12], 64, 64, 4
    $region81: #{tpu_custom_call.1} parent=1 // pred_fallthru
      _
    // Predicated region
    $region82: #{tpu_custom_call.1} parent=1 // pred_check
      _
    $region83: #{tpu_custom_call.1} parent=1 // pred_check_branch
      %145 = sbr.rel (0) target = $region85
    $region84: #{tpu_custom_call.1} parent=1 // pred_region
      _
    $region85: #{tpu_custom_call.1} parent=1 // pred_fallthru
      _
    // Predicated region
    $region86: #{tpu_custom_call.1} parent=1 // pred_check
      _
    $region87: #{tpu_custom_call.1} parent=1 // pred_check_branch
      %147 = sbr.rel (0) target = $region89
    $region88: #{tpu_custom_call.1} parent=1 // pred_region
      %s149 = ssub.s32 1024, 1024
      %150 = vsyncadd [#allocation15], %s149
      %s151 = sshll.u32 [#allocation14], 4
      %s152 = int_to_ptr.vmem [resolvable:$true] %s151
      %157 = dma.hbm_to_vmem [thread:$0]  %s21, 1024, %s152, [#allocation15], 64, 64, 4
    $region89: #{tpu_custom_call.1} parent=1 // pred_fallthru
      _
    // Predicated region
    $region90: #{tpu_custom_call.1} parent=1 // pred_check
      _
    $region91: #{tpu_custom_call.1} parent=1 // pred_check_branch
      %159 = sbr.rel (0) target = $region93
    $region92: #{tpu_custom_call.1} parent=1 // pred_region
      _
    $region93: #{tpu_custom_call.1} parent=1 // pred_fallthru
      _
    // Predicated region
    $region94: #{tpu_custom_call.1} parent=1 // pred_check
      _
    $region95: #{tpu_custom_call.1} parent=1 // pred_check_branch
      %161 = sbr.rel (0) target = $region97
    $region96: #{tpu_custom_call.1} parent=1 // pred_region
      %162 = dma.done [#allocation3], 512
    $region97: #{tpu_custom_call.1} parent=1 // pred_fallthru
      _
    // Predicated region
    $region98: #{tpu_custom_call.1} parent=1 // pred_check
      _
    $region99: #{tpu_custom_call.1} parent=1 // pred_check_branch
      %164 = sbr.rel (0) target = $region101
    $region100: #{tpu_custom_call.1} parent=1 // pred_region
      %165 = dma.done [#allocation6], 1024
    $region101: #{tpu_custom_call.1} parent=1 // pred_fallthru
      _
    // Predicated region
    $region102: #{tpu_custom_call.1} parent=1 // pred_check
      _
    $region103: #{tpu_custom_call.1} parent=1 // pred_check_branch
      %167 = sbr.rel (0) target = $region105
    $region104: #{tpu_custom_call.1} parent=1 // pred_region
      %168 = dma.done [#allocation6], 2048
    $region105: #{tpu_custom_call.1} parent=1 // pred_fallthru
      _
    // Predicated region
    $region106: #{tpu_custom_call.1} parent=1 // pred_check
      _
    $region107: #{tpu_custom_call.1} parent=1 // pred_check_branch
      %170 = sbr.rel (0) target = $region109
    $region108: #{tpu_custom_call.1} parent=1 // pred_region
      %171 = dma.done [#allocation9], 1024
    $region109: #{tpu_custom_call.1} parent=1 // pred_fallthru
      _
    // Predicated region
    $region110: #{tpu_custom_call.1} parent=1 // pred_check
      _
    $region111: #{tpu_custom_call.1} parent=1 // pred_check_branch
      %173 = sbr.rel (0) target = $region113
    $region112: #{tpu_custom_call.1} parent=1 // pred_region
      %174 = dma.done [#allocation9], 2048
    $region113: #{tpu_custom_call.1} parent=1 // pred_fallthru
      _
    // Predicated region
    $region114: #{tpu_custom_call.1} parent=1 // pred_check
      _
    $region115: #{tpu_custom_call.1} parent=1 // pred_check_branch
      %176 = sbr.rel (0) target = $region117
    $region116: #{tpu_custom_call.1} parent=1 // pred_region
      %177 = dma.done [#allocation12], 2048
    $region117: #{tpu_custom_call.1} parent=1 // pred_fallthru
      _
    // Predicated region
    $region118: #{tpu_custom_call.1} parent=1 // pred_check
      _
    $region119: #{tpu_custom_call.1} parent=1 // pred_check_branch
      %179 = sbr.rel (0) target = $region121
    $region120: #{tpu_custom_call.1} parent=1 // pred_region
      %180 = dma.done [#allocation12], 1024
    $region121: #{tpu_custom_call.1} parent=1 // pred_fallthru
      _
    // Predicated region
    $region122: #{tpu_custom_call.1} parent=1 // pred_check
      _
    $region123: #{tpu_custom_call.1} parent=1 // pred_check_branch
      %182 = sbr.rel (0) target = $region125
    $region124: #{tpu_custom_call.1} parent=1 // pred_region
      %183 = dma.done [#allocation15], 1024
    $region125: #{tpu_custom_call.1} parent=1 // pred_fallthru
      _
    %v185 = vld [vmem:[%s0] sm:$0xf]
    %v186 = vld [vmem:[%s0 + $0x4] sm:$0xf]
    %v187 = vld [vmem:[%s0 + $0x8] sm:$0xf]
    %v188 = vld [vmem:[%s0 + $0xc] sm:$0xf]
    %v189 = vld [vmem:[%s0 + $0x10] sm:$0xf]
    %v190 = vld [vmem:[%s0 + $0x14] sm:$0xf]
    %v191 = vld [vmem:[%s0 + $0x18] sm:$0xf]
    %v192 = vld [vmem:[%s0 + $0x1c] sm:$0xf]
    %v193 = vld [vmem:[%s1] sm:$0xf]
    %v194 = vld [vmem:[%s1 + $0x4] sm:$0xf]
    %v195 = vld [vmem:[%s1 + $0x8] sm:$0xf]
    %v196 = vld [vmem:[%s1 + $0xc] sm:$0xf]
    %v197 = vld [vmem:[%s1 + $0x10] sm:$0xf]
    %v198 = vld [vmem:[%s1 + $0x14] sm:$0xf]
    %v199 = vld [vmem:[%s1 + $0x18] sm:$0xf]
    %v200 = vld [vmem:[%s1 + $0x1c] sm:$0xf]
    %v201 = vld [vmem:[%s1 + $0x20] sm:$0xf]
    %v202 = vld [vmem:[%s1 + $0x24] sm:$0xf]
    %v203 = vld [vmem:[%s1 + $0x28] sm:$0xf]
    %v204 = vld [vmem:[%s1 + $0x2c] sm:$0xf]
    %v205 = vld [vmem:[%s1 + $0x30] sm:$0xf]
    %v206 = vld [vmem:[%s1 + $0x34] sm:$0xf]
    %v207 = vld [vmem:[%s1 + $0x38] sm:$0xf]
    %v208 = vld [vmem:[%s1 + $0x3c] sm:$0xf]
    %v209 = vld [vmem:[%s2] sm:$0xf]
    %v210 = vld [vmem:[%s2 + $0x4] sm:$0xf]
    %v211 = vld [vmem:[%s2 + $0x8] sm:$0xf]
    %v212 = vld [vmem:[%s2 + $0xc] sm:$0xf]
    %v213 = vld [vmem:[%s2 + $0x10] sm:$0xf]
    %v214 = vld [vmem:[%s2 + $0x14] sm:$0xf]
    %v215 = vld [vmem:[%s2 + $0x18] sm:$0xf]
    %v216 = vld [vmem:[%s2 + $0x1c] sm:$0xf]
    %v217 = vld [vmem:[%s2 + $0x20] sm:$0xf]
    %v218 = vld [vmem:[%s2 + $0x24] sm:$0xf]
    %v219 = vld [vmem:[%s2 + $0x28] sm:$0xf]
    %v220 = vld [vmem:[%s2 + $0x2c] sm:$0xf]
    %v221 = vld [vmem:[%s2 + $0x30] sm:$0xf]
    %v222 = vld [vmem:[%s2 + $0x34] sm:$0xf]
    %v223 = vld [vmem:[%s2 + $0x38] sm:$0xf]
    %v224 = vld [vmem:[%s2 + $0x3c] sm:$0xf]
    %v225 = vld [vmem:[#allocation2] sm:$0xf]
    %v226 = vld [vmem:[#allocation2 + $0x4] sm:$0xf]
    %v227 = vld [vmem:[#allocation2 + $0x8] sm:$0xf]
    %v228 = vld [vmem:[#allocation2 + $0xc] sm:$0xf]
    %v229 = vld [vmem:[#allocation2 + $0x10] sm:$0xf]
    %v230 = vld [vmem:[#allocation2 + $0x14] sm:$0xf]
    %v231 = vld [vmem:[#allocation2 + $0x18] sm:$0xf]
    %v232 = vld [vmem:[#allocation2 + $0x1c] sm:$0xf]
    %v233 = vld [vmem:[%s4] sm:$0xff]
    %v234 = vld [vmem:[%s4 + $0x8] sm:$0xff]
    %v235 = vld [vmem:[%s4 + $0x10] sm:$0xff]
    %v236 = vld [vmem:[%s4 + $0x18] sm:$0xff]
    %v237 = vld [vmem:[%s4 + $0x20] sm:$0xff]
    %v238 = vld [vmem:[%s4 + $0x28] sm:$0xff]
    %v239 = vld [vmem:[%s4 + $0x30] sm:$0xff]
    %v240 = vld [vmem:[%s4 + $0x38] sm:$0xff]
    %v241 = vld [vmem:[%s5] sm:$0xf]
    %v242 = vld [vmem:[%s6] sm:$0x1]
    %v244 = vlaneseq
    %v245 = vshrl.u32 %v244, 7
    %v246 = vsub.s32 0, %v245
    %v247 = vrot.slane %v242, %v246
    %v257 = vunpack.c.l.b16 %v185
    %v258 = vunpack.c.l.b16 %v186
    %v259 = vunpack.c.l.b16 %v187
    %v260 = vunpack.c.l.b16 %v188
    %v261 = vunpack.c.l.b16 %v189
    %v262 = vunpack.c.l.b16 %v190
    %v263 = vunpack.c.l.b16 %v191
    %v264 = vunpack.c.l.b16 %v192
    %v265 = vpack.c.b16 %v258, %v257
    %v266 = vpack.c.b16 %v260, %v259
    %v267 = vpack.c.b16 %v262, %v261
    %v268 = vpack.c.b16 %v264, %v263
    %vm269 = vcmask 64512
    %v271 = vsel %vm269, %v265, 0
    %v274 = vsel %vm269, %v266, 0
    %v277 = vsel %vm269, %v267, 0
    %v280 = vsel %vm269, %v268, 0
    %vm282 = vcmask 1043456
    %v284 = vsel %vm282, %v241, 0
    %286 = vmatprep.subr.bf16.mxu0 0
    %287 = vmatpush1.bf16.msra.mxu0 %v284
    %288 = vmatprep.subr.bf16.mxu0 0
    %289 = vmatpush1.bf16.msra.mxu0 0
    %290 = vmatprep.subr.bf16.mxu0 0
    %291 = vmatpush1.bf16.msra.mxu0 0
    %292 = vmatprep.subr.bf16.mxu0 0
    %293 = vmatpush1.bf16.msra.mxu0 0
    %294 = vmatprep.subr.bf16.mxu0 0
    %295 = vmatpush1.bf16.msra.mxu0 0
    %296 = vmatprep.subr.bf16.mxu0 0
    %297 = vmatpush1.bf16.msra.mxu0 0
    %298 = vmatprep.subr.bf16.mxu0 0
    %299 = vmatpush1.bf16.msra.mxu0 0
    %300 = vmatprep.subr.bf16.mxu0 0
    %301 = vmatpush1.bf16.msra.mxu0 0
    %302 = vmatprep.subr.bf16.mxu0 0
    %303 = vmatpush1.bf16.msra.mxu0 0
    %304 = vmatprep.subr.bf16.mxu0 0
    %305 = vmatpush1.bf16.msra.mxu0 0
    %306 = vmatprep.subr.bf16.mxu0 0
    %307 = vmatpush1.bf16.msra.mxu0 0
    %308 = vmatprep.subr.bf16.mxu0 0
    %309 = vmatpush1.bf16.msra.mxu0 0
    %310 = vmatprep.subr.bf16.mxu0 0
    %311 = vmatpush1.bf16.msra.mxu0 0
    %312 = vmatprep.subr.bf16.mxu0 0
    %313 = vmatpush1.bf16.msra.mxu0 0
    %314 = vmatprep.subr.bf16.mxu0 0
    %315 = vmatpush1.bf16.msra.mxu0 0
    %316 = vmatprep.subr.bf16.mxu0 0
    %317 = vmatpush1.bf16.msra.mxu0 0
    %318 = vmatprep.mubr.bf16.mxu0 0
    %319 = vmatmul.mubr.bf16.gmra.mrb[0].mxu0 %v271
    %v320 = vpop.f32.mrb[0].mxu0
    %v321 = vadd.f32 %v247, %v320
    %v322 = vpop.f32.mrb[0].mxu0
    %v323 = vpop.f32.mrb[0].mxu0
    %v324 = vadd.f32 %v247, %v323
    %v325 = vpop.f32.mrb[0].mxu0
    %326 = vmatprep.mubr.bf16.mxu0 0
    %327 = vmatmul.mubr.bf16.gmra.mrb[0].mxu0 %v274
    %v328 = vpop.f32.mrb[0].mxu0
    %v329 = vadd.f32 %v247, %v328
    %v330 = vpop.f32.mrb[0].mxu0
    %v331 = vpop.f32.mrb[0].mxu0
    %v332 = vadd.f32 %v247, %v331
    %v333 = vpop.f32.mrb[0].mxu0
    %334 = vmatprep.mubr.bf16.mxu0 0
    %335 = vmatmul.mubr.bf16.gmra.mrb[0].mxu0 %v277
    %v336 = vpop.f32.mrb[0].mxu0
    %v337 = vadd.f32 %v247, %v336
    %v338 = vpop.f32.mrb[0].mxu0
    %v339 = vpop.f32.mrb[0].mxu0
    %v340 = vadd.f32 %v247, %v339
    %v341 = vpop.f32.mrb[0].mxu0
    %342 = vmatprep.mubr.bf16.mxu0 0
    %343 = vmatmul.mubr.bf16.gmra.mrb[0].mxu0 %v280
    %v344 = vpop.f32.mrb[0].mxu0
    %v345 = vadd.f32 %v247, %v344
    %v346 = vpop.f32.mrb[0].mxu0
    %v347 = vpop.f32.mrb[0].mxu0
    %v348 = vadd.f32 %v247, %v347
    %v349 = vpop.f32.mrb[0].mxu0
    %350 = vdwg.mxu0
    %v351 = vmax.f32 %v321, 0.0
    %v352 = vmax.f32 %v324, 0.0
    %v353 = vmax.f32 %v329, 0.0
    %v354 = vmax.f32 %v332, 0.0
    %v355 = vmax.f32 %v337, 0.0
    %v356 = vmax.f32 %v340, 0.0
    %v357 = vmax.f32 %v345, 0.0
    %v358 = vmax.f32 %v348, 0.0
    %v359 = vld [vmem:[%s7] sm:$0x3]
    %v360 = vld [vmem:[%s8] sm:$0x1]
    %v362 = vlaneseq
    %v363 = vshrl.u32 %v362, 7
    %v364 = vsub.s32 0, %v363
    %v365 = vrot.slane %v360, %v364
    %v383 = vunpack.c.l.b16 %v193
    %v384 = vunpack.c.l.b16 %v194
    %v385 = vunpack.c.l.b16 %v195
    %v386 = vunpack.c.l.b16 %v196
    %v387 = vunpack.c.l.b16 %v197
    %v388 = vunpack.c.l.b16 %v198
    %v389 = vunpack.c.l.b16 %v199
    %v390 = vunpack.c.l.b16 %v200
    %v391 = vunpack.c.l.b16 %v201
    %v392 = vunpack.c.l.b16 %v202
    %v393 = vunpack.c.l.b16 %v203
    %v394 = vunpack.c.l.b16 %v204
    %v395 = vunpack.c.l.b16 %v205
    %v396 = vunpack.c.l.b16 %v206
    %v397 = vunpack.c.l.b16 %v207
    %v398 = vunpack.c.l.b16 %v208
    %v399 = vpack.c.b16 %v384, %v383
    %v400 = vpack.c.b16 %v386, %v385
    %v401 = vpack.c.b16 %v388, %v387
    %v402 = vpack.c.b16 %v390, %v389
    %v403 = vpack.c.b16 %v392, %v391
    %v404 = vpack.c.b16 %v394, %v393
    %v405 = vpack.c.b16 %v396, %v395
    %v406 = vpack.c.b16 %v398, %v397
    %vm407 = vcmask 31744
    %v409 = vsel %vm407, %v399, 0
    %v412 = vsel %vm407, %v400, 0
    %v415 = vsel %vm407, %v401, 0
    %v418 = vsel %vm407, %v402, 0
    %v421 = vsel %vm407, %v403, 0
    %v424 = vsel %vm407, %v404, 0
    %v427 = vsel %vm407, %v405, 0
    %v430 = vsel %vm407, %v406, 0
    %vm432 = vcmask 1041408
    %v434 = vsel %vm432, %v359, 0
    %436 = vmatprep.subr.bf16.mxu0 0
    %437 = vmatpush1.bf16.msra.mxu0 %v434
    %438 = vmatprep.subr.bf16.mxu0 0
    %439 = vmatpush1.bf16.msra.mxu0 0
    %440 = vmatprep.subr.bf16.mxu0 0
    %441 = vmatpush1.bf16.msra.mxu0 0
    %442 = vmatprep.subr.bf16.mxu0 0
    %443 = vmatpush1.bf16.msra.mxu0 0
    %444 = vmatprep.subr.bf16.mxu0 0
    %445 = vmatpush1.bf16.msra.mxu0 0
    %446 = vmatprep.subr.bf16.mxu0 0
    %447 = vmatpush1.bf16.msra.mxu0 0
    %448 = vmatprep.subr.bf16.mxu0 0
    %449 = vmatpush1.bf16.msra.mxu0 0
    %450 = vmatprep.subr.bf16.mxu0 0
    %451 = vmatpush1.bf16.msra.mxu0 0
    %452 = vmatprep.subr.bf16.mxu0 0
    %453 = vmatpush1.bf16.msra.mxu0 0
    %454 = vmatprep.subr.bf16.mxu0 0
    %455 = vmatpush1.bf16.msra.mxu0 0
    %456 = vmatprep.subr.bf16.mxu0 0
    %457 = vmatpush1.bf16.msra.mxu0 0
    %458 = vmatprep.subr.bf16.mxu0 0
    %459 = vmatpush1.bf16.msra.mxu0 0
    %460 = vmatprep.subr.bf16.mxu0 0
    %461 = vmatpush1.bf16.msra.mxu0 0
    %462 = vmatprep.subr.bf16.mxu0 0
    %463 = vmatpush1.bf16.msra.mxu0 0
    %464 = vmatprep.subr.bf16.mxu0 0
    %465 = vmatpush1.bf16.msra.mxu0 0
    %466 = vmatprep.subr.bf16.mxu0 0
    %467 = vmatpush1.bf16.msra.mxu0 0
    %468 = vmatprep.mubr.bf16.mxu0 0
    %469 = vmatmul.mubr.bf16.gmra.mrb[0].mxu0 %v409
    %v470 = vpop.f32.mrb[0].mxu0
    %v471 = vadd.f32 %v365, %v470
    %v472 = vpop.f32.mrb[0].mxu0
    %v473 = vpop.f32.mrb[0].mxu0
    %v474 = vadd.f32 %v365, %v473
    %v475 = vpop.f32.mrb[0].mxu0
    %476 = vmatprep.mubr.bf16.mxu0 0
    %477 = vmatmul.mubr.bf16.gmra.mrb[0].mxu0 %v412
    %v478 = vpop.f32.mrb[0].mxu0
    %v479 = vadd.f32 %v365, %v478
    %v480 = vpop.f32.mrb[0].mxu0
    %v481 = vpop.f32.mrb[0].mxu0
    %v482 = vadd.f32 %v365, %v481
    %v483 = vpop.f32.mrb[0].mxu0
    %484 = vmatprep.mubr.bf16.mxu0 0
    %485 = vmatmul.mubr.bf16.gmra.mrb[0].mxu0 %v415
    %v486 = vpop.f32.mrb[0].mxu0
    %v487 = vadd.f32 %v365, %v486
    %v488 = vpop.f32.mrb[0].mxu0
    %v489 = vpop.f32.mrb[0].mxu0
    %v490 = vadd.f32 %v365, %v489
    %v491 = vpop.f32.mrb[0].mxu0
    %492 = vmatprep.mubr.bf16.mxu0 0
    %493 = vmatmul.mubr.bf16.gmra.mrb[0].mxu0 %v418
    %v494 = vpop.f32.mrb[0].mxu0
    %v495 = vadd.f32 %v365, %v494
    %v496 = vpop.f32.mrb[0].mxu0
    %v497 = vpop.f32.mrb[0].mxu0
    %v498 = vadd.f32 %v365, %v497
    %v499 = vpop.f32.mrb[0].mxu0
    %500 = vmatprep.mubr.bf16.mxu0 0
    %501 = vmatmul.mubr.bf16.gmra.mrb[0].mxu0 %v421
    %v502 = vpop.f32.mrb[0].mxu0
    %v503 = vadd.f32 %v365, %v502
    %v504 = vpop.f32.mrb[0].mxu0
    %v505 = vpop.f32.mrb[0].mxu0
    %v506 = vadd.f32 %v365, %v505
    %v507 = vpop.f32.mrb[0].mxu0
    %508 = vmatprep.mubr.bf16.mxu0 0
    %509 = vmatmul.mubr.bf16.gmra.mrb[0].mxu0 %v424
    %v510 = vpop.f32.mrb[0].mxu0
    %v511 = vadd.f32 %v365, %v510
    %v512 = vpop.f32.mrb[0].mxu0
    %v513 = vpop.f32.mrb[0].mxu0
    %v514 = vadd.f32 %v365, %v513
    %v515 = vpop.f32.mrb[0].mxu0
    %516 = vmatprep.mubr.bf16.mxu0 0
    %517 = vmatmul.mubr.bf16.gmra.mrb[0].mxu0 %v427
    %v518 = vpop.f32.mrb[0].mxu0
    %v519 = vadd.f32 %v365, %v518
    %v520 = vpop.f32.mrb[0].mxu0
    %v521 = vpop.f32.mrb[0].mxu0
    %v522 = vadd.f32 %v365, %v521
    %v523 = vpop.f32.mrb[0].mxu0
    %524 = vmatprep.mubr.bf16.mxu0 0
    %525 = vmatmul.mubr.bf16.gmra.mrb[0].mxu0 %v430
    %v526 = vpop.f32.mrb[0].mxu0
    %v527 = vadd.f32 %v365, %v526
    %v528 = vpop.f32.mrb[0].mxu0
    %v529 = vpop.f32.mrb[0].mxu0
    %v530 = vadd.f32 %v365, %v529
    %v531 = vpop.f32.mrb[0].mxu0
    %532 = vdwg.mxu0
    %v533 = vmax.f32 %v471, 0.0
    %v534 = vmax.f32 %v474, 0.0
    %v535 = vmax.f32 %v479, 0.0
    %v536 = vmax.f32 %v482, 0.0
    %v537 = vmax.f32 %v487, 0.0
    %v538 = vmax.f32 %v490, 0.0
    %v539 = vmax.f32 %v495, 0.0
    %v540 = vmax.f32 %v498, 0.0
    %v541 = vmax.f32 %v503, 0.0
    %v542 = vmax.f32 %v506, 0.0
    %v543 = vmax.f32 %v511, 0.0
    %v544 = vmax.f32 %v514, 0.0
    %v545 = vmax.f32 %v519, 0.0
    %v546 = vmax.f32 %v522, 0.0
    %v547 = vmax.f32 %v527, 0.0
    %v548 = vmax.f32 %v530, 0.0
    %v549 = vpack.c.bf16 %v352, %v351
    %v550 = vpack.c.bf16 %v354, %v353
    %v551 = vpack.c.bf16 %v356, %v355
    %v552 = vpack.c.bf16 %v358, %v357
    %v553 = vpack.c.bf16 %v534, %v533
    %v554 = vpack.c.bf16 %v536, %v535
    %v555 = vpack.c.bf16 %v538, %v537
    %v556 = vpack.c.bf16 %v540, %v539
    %v557 = vpack.c.bf16 %v542, %v541
    %v558 = vpack.c.bf16 %v544, %v543
    %v559 = vpack.c.bf16 %v546, %v545
    %v560 = vpack.c.bf16 %v548, %v547
    %v561 = vld [vmem:[%s10] sm:$0xff]
    %v562 = vld [vmem:[%s10 + $0x8] sm:$0xff]
    %v563 = vld [vmem:[%s10 + $0x10] sm:$0xff]
    %v564 = vld [vmem:[%s10 + $0x18] sm:$0xff]
    %v565 = vld [vmem:[%s10 + $0x20] sm:$0xff]
    %v566 = vld [vmem:[%s10 + $0x28] sm:$0xff]
    %v567 = vld [vmem:[%s10 + $0x30] sm:$0xff]
    %v568 = vld [vmem:[%s10 + $0x38] sm:$0xff]
    %v569 = vld [vmem:[%s10 + $0x40] sm:$0xff]
    %v570 = vld [vmem:[%s10 + $0x48] sm:$0xff]
    %v571 = vld [vmem:[%s10 + $0x50] sm:$0xff]
    %v572 = vld [vmem:[%s10 + $0x58] sm:$0xff]
    %v573 = vld [vmem:[%s10 + $0x60] sm:$0xff]
    %v574 = vld [vmem:[%s10 + $0x68] sm:$0xff]
    %v575 = vld [vmem:[%s10 + $0x70] sm:$0xff]
    %v576 = vld [vmem:[%s10 + $0x78] sm:$0xff]
    %v593 = vunpack.c.l.b16 %v561
    %v594 = vunpack.c.h.b16 %v561
    %v595 = vunpack.c.l.b16 %v562
    %v596 = vunpack.c.h.b16 %v562
    %v597 = vunpack.c.l.b16 %v563
    %v598 = vunpack.c.h.b16 %v563
    %v599 = vunpack.c.l.b16 %v564
    %v600 = vunpack.c.h.b16 %v564
    %v601 = vunpack.c.l.b16 %v565
    %v602 = vunpack.c.h.b16 %v565
    %v603 = vunpack.c.l.b16 %v566
    %v604 = vunpack.c.h.b16 %v566
    %v605 = vunpack.c.l.b16 %v567
    %v606 = vunpack.c.h.b16 %v567
    %v607 = vunpack.c.l.b16 %v568
    %v608 = vunpack.c.h.b16 %v568
    %v609 = vunpack.c.l.b16 %v569
    %v610 = vunpack.c.h.b16 %v569
    %v611 = vunpack.c.l.b16 %v570
    %v612 = vunpack.c.h.b16 %v570
    %v613 = vunpack.c.l.b16 %v571
    %v614 = vunpack.c.h.b16 %v571
    %v615 = vunpack.c.l.b16 %v572
    %v616 = vunpack.c.h.b16 %v572
    %v617 = vunpack.c.l.b16 %v573
    %v618 = vunpack.c.h.b16 %v573
    %v619 = vunpack.c.l.b16 %v574
    %v620 = vunpack.c.h.b16 %v574
    %v621 = vunpack.c.l.b16 %v575
    %v622 = vunpack.c.h.b16 %v575
    %v623 = vunpack.c.l.b16 %v576
    %v624 = vunpack.c.h.b16 %v576
    %v625 = vpack.c.b16 %v595, %v593
    %v626 = vpack.c.b16 %v596, %v594
    %v627 = vpack.c.b16 %v599, %v597
    %v628 = vpack.c.b16 %v600, %v598
    %v629 = vpack.c.b16 %v603, %v601
    %v630 = vpack.c.b16 %v604, %v602
    %v631 = vpack.c.b16 %v607, %v605
    %v632 = vpack.c.b16 %v608, %v606
    %v633 = vpack.c.b16 %v611, %v609
    %v634 = vpack.c.b16 %v612, %v610
    %v635 = vpack.c.b16 %v615, %v613
    %v636 = vpack.c.b16 %v616, %v614
    %v637 = vpack.c.b16 %v619, %v617
    %v638 = vpack.c.b16 %v620, %v618
    %v639 = vpack.c.b16 %v623, %v621
    %v640 = vpack.c.b16 %v624, %v622
    %657 = vmatprep.subr.bf16.mxu0 %v626
    %658 = vmatpush1.bf16.msra.mxu0 %v625
    %659 = vmatprep.subr.bf16.mxu0 %v628
    %660 = vmatpush1.bf16.msra.mxu0 %v627
    %661 = vmatprep.subr.bf16.mxu0 %v630
    %662 = vmatpush1.bf16.msra.mxu0 %v629
    %663 = vmatprep.subr.bf16.mxu0 %v632
    %664 = vmatpush1.bf16.msra.mxu0 %v631
    %665 = vmatprep.subr.bf16.mxu0 %v634
    %666 = vmatpush1.bf16.msra.mxu0 %v633
    %667 = vmatprep.subr.bf16.mxu0 %v636
    %668 = vmatpush1.bf16.msra.mxu0 %v635
    %669 = vmatprep.subr.bf16.mxu0 %v638
    %670 = vmatpush1.bf16.msra.mxu0 %v637
    %671 = vmatprep.subr.bf16.mxu0 %v640
    %672 = vmatpush1.bf16.msra.mxu0 %v639
    %673 = vmatprep.subr.bf16.mxu0 0
    %674 = vmatpush1.bf16.msra.mxu0 0
    %675 = vmatprep.subr.bf16.mxu0 0
    %676 = vmatpush1.bf16.msra.mxu0 0
    %677 = vmatprep.subr.bf16.mxu0 0
    %678 = vmatpush1.bf16.msra.mxu0 0
    %679 = vmatprep.subr.bf16.mxu0 0
    %680 = vmatpush1.bf16.msra.mxu0 0
    %681 = vmatprep.subr.bf16.mxu0 0
    %682 = vmatpush1.bf16.msra.mxu0 0
    %683 = vmatprep.subr.bf16.mxu0 0
    %684 = vmatpush1.bf16.msra.mxu0 0
    %685 = vmatprep.subr.bf16.mxu0 0
    %686 = vmatpush1.bf16.msra.mxu0 0
    %687 = vmatprep.subr.bf16.mxu0 0
    %688 = vmatpush1.bf16.msra.mxu0 0
    %689 = vmatprep.mubr.bf16.mxu0 0
    %690 = vmatmul.mubr.bf16.gmra.mrb[0].mxu0 %v549
    %v691 = vpop.f32.mrb[0].mxu0
    %v692 = vadd.f32 0.0, %v691
    %v693 = vpop.f32.mrb[0].mxu0
    %v694 = vadd.f32 0.0, %v693
    %v695 = vpop.f32.mrb[0].mxu0
    %v696 = vadd.f32 0.0, %v695
    %v697 = vpop.f32.mrb[0].mxu0
    %v698 = vadd.f32 0.0, %v697
    %699 = vmatprep.mubr.bf16.mxu0 0
    %700 = vmatmul.mubr.bf16.gmra.mrb[0].mxu0 %v550
    %v701 = vpop.f32.mrb[0].mxu0
    %v702 = vadd.f32 0.0, %v701
    %v703 = vpop.f32.mrb[0].mxu0
    %v704 = vadd.f32 0.0, %v703
    %v705 = vpop.f32.mrb[0].mxu0
    %v706 = vadd.f32 0.0, %v705
    %v707 = vpop.f32.mrb[0].mxu0
    %v708 = vadd.f32 0.0, %v707
    %709 = vmatprep.mubr.bf16.mxu0 0
    %710 = vmatmul.mubr.bf16.gmra.mrb[0].mxu0 %v551
    %v711 = vpop.f32.mrb[0].mxu0
    %v712 = vadd.f32 0.0, %v711
    %v713 = vpop.f32.mrb[0].mxu0
    %v714 = vadd.f32 0.0, %v713
    %v715 = vpop.f32.mrb[0].mxu0
    %v716 = vadd.f32 0.0, %v715
    %v717 = vpop.f32.mrb[0].mxu0
    %v718 = vadd.f32 0.0, %v717
    %719 = vmatprep.mubr.bf16.mxu0 0
    %720 = vmatmul.mubr.bf16.gmra.mrb[0].mxu0 %v552
    %v721 = vpop.f32.mrb[0].mxu0
    %v722 = vadd.f32 0.0, %v721
    %v723 = vpop.f32.mrb[0].mxu0
    %v724 = vadd.f32 0.0, %v723
    %v725 = vpop.f32.mrb[0].mxu0
    %v726 = vadd.f32 0.0, %v725
    %v727 = vpop.f32.mrb[0].mxu0
    %v728 = vadd.f32 0.0, %v727
    %729 = vdwg.mxu0
    %v730 = vpack.c.bf16 %v696, %v692
    %v731 = vpack.c.bf16 %v706, %v702
    %v732 = vpack.c.bf16 %v716, %v712
    %v733 = vpack.c.bf16 %v726, %v722
    %v734 = vpack.c.bf16 %v698, %v694
    %v735 = vpack.c.bf16 %v708, %v704
    %v736 = vpack.c.bf16 %v718, %v714
    %v737 = vpack.c.bf16 %v728, %v724
    %v754 = vunpack.c.l.b16 %v209
    %v755 = vunpack.c.l.b16 %v210
    %v756 = vunpack.c.l.b16 %v211
    %v757 = vunpack.c.l.b16 %v212
    %v758 = vunpack.c.l.b16 %v213
    %v759 = vunpack.c.l.b16 %v214
    %v760 = vunpack.c.l.b16 %v215
    %v761 = vunpack.c.l.b16 %v216
    %v762 = vunpack.c.l.b16 %v217
    %v763 = vunpack.c.l.b16 %v218
    %v764 = vunpack.c.l.b16 %v219
    %v765 = vunpack.c.l.b16 %v220
    %v766 = vunpack.c.l.b16 %v221
    %v767 = vunpack.c.l.b16 %v222
    %v768 = vunpack.c.l.b16 %v223
    %v769 = vunpack.c.l.b16 %v224
    %v770 = vpack.c.b16 %v755, %v754
    %v771 = vpack.c.b16 %v757, %v756
    %v772 = vpack.c.b16 %v759, %v758
    %v773 = vpack.c.b16 %v761, %v760
    %v774 = vpack.c.b16 %v763, %v762
    %v775 = vpack.c.b16 %v765, %v764
    %v776 = vpack.c.b16 %v767, %v766
    %v777 = vpack.c.b16 %v769, %v768
    %786 = vmatprep.subr.bf16.mxu0 0
    %787 = vmatpush1.bf16.msra.mxu0 %v730
    %788 = vmatprep.subr.bf16.mxu0 0
    %789 = vmatpush1.bf16.msra.mxu0 %v731
    %790 = vmatprep.subr.bf16.mxu0 0
    %791 = vmatpush1.bf16.msra.mxu0 %v732
    %792 = vmatprep.subr.bf16.mxu0 0
    %793 = vmatpush1.bf16.msra.mxu0 %v733
    %794 = vmatprep.subr.bf16.mxu0 0
    %795 = vmatpush1.bf16.msra.mxu0 %v734
    %796 = vmatprep.subr.bf16.mxu0 0
    %797 = vmatpush1.bf16.msra.mxu0 %v735
    %798 = vmatprep.subr.bf16.mxu0 0
    %799 = vmatpush1.bf16.msra.mxu0 %v736
    %800 = vmatprep.subr.bf16.mxu0 0
    %801 = vmatpush1.bf16.msra.mxu0 %v737
    %802 = vmatprep.subr.bf16.mxu0 0
    %803 = vmatpush1.bf16.msra.mxu0 0
    %804 = vmatprep.subr.bf16.mxu0 0
    %805 = vmatpush1.bf16.msra.mxu0 0
    %806 = vmatprep.subr.bf16.mxu0 0
    %807 = vmatpush1.bf16.msra.mxu0 0
    %808 = vmatprep.subr.bf16.mxu0 0
    %809 = vmatpush1.bf16.msra.mxu0 0
    %810 = vmatprep.subr.bf16.mxu0 0
    %811 = vmatpush1.bf16.msra.mxu0 0
    %812 = vmatprep.subr.bf16.mxu0 0
    %813 = vmatpush1.bf16.msra.mxu0 0
    %814 = vmatprep.subr.bf16.mxu0 0
    %815 = vmatpush1.bf16.msra.mxu0 0
    %816 = vmatprep.subr.bf16.mxu0 0
    %817 = vmatpush1.bf16.msra.mxu0 0
    %818 = vmatprep.mubr.bf16.mxu0 0
    %819 = vmatmul.mubr.bf16.gmra.mrb[0].mxu0 %v770
    %v820 = vpop.f32.mrb[0].mxu0
    %v821 = vadd.f32 0.0, %v820
    %v822 = vpop.f32.mrb[0].mxu0
    %v823 = vpop.f32.mrb[0].mxu0
    %v824 = vadd.f32 0.0, %v823
    %v825 = vpop.f32.mrb[0].mxu0
    %826 = vmatprep.mubr.bf16.mxu0 0
    %827 = vmatmul.mubr.bf16.gmra.mrb[0].mxu0 %v771
    %v828 = vpop.f32.mrb[0].mxu0
    %v829 = vadd.f32 0.0, %v828
    %v830 = vpop.f32.mrb[0].mxu0
    %v831 = vpop.f32.mrb[0].mxu0
    %v832 = vadd.f32 0.0, %v831
    %v833 = vpop.f32.mrb[0].mxu0
    %834 = vmatprep.mubr.bf16.mxu0 0
    %835 = vmatmul.mubr.bf16.gmra.mrb[0].mxu0 %v772
    %v836 = vpop.f32.mrb[0].mxu0
    %v837 = vadd.f32 0.0, %v836
    %v838 = vpop.f32.mrb[0].mxu0
    %v839 = vpop.f32.mrb[0].mxu0
    %v840 = vadd.f32 0.0, %v839
    %v841 = vpop.f32.mrb[0].mxu0
    %842 = vmatprep.mubr.bf16.mxu0 0
    %843 = vmatmul.mubr.bf16.gmra.mrb[0].mxu0 %v773
    %v844 = vpop.f32.mrb[0].mxu0
    %v845 = vadd.f32 0.0, %v844
    %v846 = vpop.f32.mrb[0].mxu0
    %v847 = vpop.f32.mrb[0].mxu0
    %v848 = vadd.f32 0.0, %v847
    %v849 = vpop.f32.mrb[0].mxu0
    %850 = vmatprep.mubr.bf16.mxu0 0
    %851 = vmatmul.mubr.bf16.gmra.mrb[0].mxu0 %v774
    %v852 = vpop.f32.mrb[0].mxu0
    %v853 = vadd.f32 0.0, %v852
    %v854 = vpop.f32.mrb[0].mxu0
    %v855 = vpop.f32.mrb[0].mxu0
    %v856 = vadd.f32 0.0, %v855
    %v857 = vpop.f32.mrb[0].mxu0
    %858 = vmatprep.mubr.bf16.mxu0 0
    %859 = vmatmul.mubr.bf16.gmra.mrb[0].mxu0 %v775
    %v860 = vpop.f32.mrb[0].mxu0
    %v861 = vadd.f32 0.0, %v860
    %v862 = vpop.f32.mrb[0].mxu0
    %v863 = vpop.f32.mrb[0].mxu0
    %v864 = vadd.f32 0.0, %v863
    %v865 = vpop.f32.mrb[0].mxu0
    %866 = vmatprep.mubr.bf16.mxu0 0
    %867 = vmatmul.mubr.bf16.gmra.mrb[0].mxu0 %v776
    %v868 = vpop.f32.mrb[0].mxu0
    %v869 = vadd.f32 0.0, %v868
    %v870 = vpop.f32.mrb[0].mxu0
    %v871 = vpop.f32.mrb[0].mxu0
    %v872 = vadd.f32 0.0, %v871
    %v873 = vpop.f32.mrb[0].mxu0
    %874 = vmatprep.mubr.bf16.mxu0 0
    %875 = vmatmul.mubr.bf16.gmra.mrb[0].mxu0 %v777
    %v876 = vpop.f32.mrb[0].mxu0
    %v877 = vadd.f32 0.0, %v876
    %v878 = vpop.f32.mrb[0].mxu0
    %v879 = vpop.f32.mrb[0].mxu0
    %v880 = vadd.f32 0.0, %v879
    %v881 = vpop.f32.mrb[0].mxu0
    %882 = vdwg.mxu0
    %v883 = vld [vmem:[#allocation5] sm:$0xf]
    %v884 = vld [vmem:[#allocation5 + $0x4] sm:$0xf]
    %v885 = vld [vmem:[#allocation5 + $0x8] sm:$0xf]
    %v886 = vld [vmem:[#allocation5 + $0xc] sm:$0xf]
    %v887 = vld [vmem:[#allocation5 + $0x10] sm:$0xf]
    %v888 = vld [vmem:[#allocation5 + $0x14] sm:$0xf]
    %v889 = vld [vmem:[#allocation5 + $0x18] sm:$0xf]
    %v890 = vld [vmem:[#allocation5 + $0x1c] sm:$0xf]
    %v891 = vld [vmem:[#allocation5 + $0x20] sm:$0xf]
    %v892 = vld [vmem:[#allocation5 + $0x24] sm:$0xf]
    %v893 = vld [vmem:[#allocation5 + $0x28] sm:$0xf]
    %v894 = vld [vmem:[#allocation5 + $0x2c] sm:$0xf]
    %v895 = vld [vmem:[#allocation5 + $0x30] sm:$0xf]
    %v896 = vld [vmem:[#allocation5 + $0x34] sm:$0xf]
    %v897 = vld [vmem:[#allocation5 + $0x38] sm:$0xf]
    %v898 = vld [vmem:[#allocation5 + $0x3c] sm:$0xf]
    %v915 = vunpack.c.l.b16 %v883
    %v916 = vunpack.c.l.b16 %v884
    %v917 = vunpack.c.l.b16 %v885
    %v918 = vunpack.c.l.b16 %v886
    %v919 = vunpack.c.l.b16 %v887
    %v920 = vunpack.c.l.b16 %v888
    %v921 = vunpack.c.l.b16 %v889
    %v922 = vunpack.c.l.b16 %v890
    %v923 = vunpack.c.l.b16 %v891
    %v924 = vunpack.c.l.b16 %v892
    %v925 = vunpack.c.l.b16 %v893
    %v926 = vunpack.c.l.b16 %v894
    %v927 = vunpack.c.l.b16 %v895
    %v928 = vunpack.c.l.b16 %v896
    %v929 = vunpack.c.l.b16 %v897
    %v930 = vunpack.c.l.b16 %v898
    %v931 = vpack.c.b16 %v916, %v915
    %v932 = vpack.c.b16 %v918, %v917
    %v933 = vpack.c.b16 %v920, %v919
    %v934 = vpack.c.b16 %v922, %v921
    %v935 = vpack.c.b16 %v924, %v923
    %v936 = vpack.c.b16 %v926, %v925
    %v937 = vpack.c.b16 %v928, %v927
    %v938 = vpack.c.b16 %v930, %v929
    %947 = vmatprep.subr.bf16.mxu0 0
    %948 = vmatpush1.bf16.msra.mxu0 %v931
    %949 = vmatprep.subr.bf16.mxu0 0
    %950 = vmatpush1.bf16.msra.mxu0 %v932
    %951 = vmatprep.subr.bf16.mxu0 0
    %952 = vmatpush1.bf16.msra.mxu0 %v933
    %953 = vmatprep.subr.bf16.mxu0 0
    %954 = vmatpush1.bf16.msra.mxu0 %v934
    %955 = vmatprep.subr.bf16.mxu0 0
    %956 = vmatpush1.bf16.msra.mxu0 %v935
    %957 = vmatprep.subr.bf16.mxu0 0
    %958 = vmatpush1.bf16.msra.mxu0 %v936
    %959 = vmatprep.subr.bf16.mxu0 0
    %960 = vmatpush1.bf16.msra.mxu0 %v937
    %961 = vmatprep.subr.bf16.mxu0 0
    %962 = vmatpush1.bf16.msra.mxu0 %v938
    %963 = vmatprep.subr.bf16.mxu0 0
    %964 = vmatpush1.bf16.msra.mxu0 0
    %965 = vmatprep.subr.bf16.mxu0 0
    %966 = vmatpush1.bf16.msra.mxu0 0
    %967 = vmatprep.subr.bf16.mxu0 0
    %968 = vmatpush1.bf16.msra.mxu0 0
    %969 = vmatprep.subr.bf16.mxu0 0
    %970 = vmatpush1.bf16.msra.mxu0 0
    %971 = vmatprep.subr.bf16.mxu0 0
    %972 = vmatpush1.bf16.msra.mxu0 0
    %973 = vmatprep.subr.bf16.mxu0 0
    %974 = vmatpush1.bf16.msra.mxu0 0
    %975 = vmatprep.subr.bf16.mxu0 0
    %976 = vmatpush1.bf16.msra.mxu0 0
    %977 = vmatprep.subr.bf16.mxu0 0
    %978 = vmatpush1.bf16.msra.mxu0 0
    %979 = vmatprep.mubr.bf16.mxu0 0
    %980 = vmatmul.mubr.bf16.gmra.mrb[0].mxu0 %v553
    %v981 = vpop.f32.mrb[0].mxu0
    %v982 = vadd.f32 %v821, %v981
    %v983 = vpop.f32.mrb[0].mxu0
    %v984 = vpop.f32.mrb[0].mxu0
    %v985 = vadd.f32 %v824, %v984
    %v986 = vpop.f32.mrb[0].mxu0
    %987 = vmatprep.mubr.bf16.mxu0 0
    %988 = vmatmul.mubr.bf16.gmra.mrb[0].mxu0 %v554
    %v989 = vpop.f32.mrb[0].mxu0
    %v990 = vadd.f32 %v829, %v989
    %v991 = vpop.f32.mrb[0].mxu0
    %v992 = vpop.f32.mrb[0].mxu0
    %v993 = vadd.f32 %v832, %v992
    %v994 = vpop.f32.mrb[0].mxu0
    %995 = vmatprep.mubr.bf16.mxu0 0
    %996 = vmatmul.mubr.bf16.gmra.mrb[0].mxu0 %v555
    %v997 = vpop.f32.mrb[0].mxu0
    %v998 = vadd.f32 %v837, %v997
    %v999 = vpop.f32.mrb[0].mxu0
    %v1000 = vpop.f32.mrb[0].mxu0
    %v1001 = vadd.f32 %v840, %v1000
    %v1002 = vpop.f32.mrb[0].mxu0
    %1003 = vmatprep.mubr.bf16.mxu0 0
    %1004 = vmatmul.mubr.bf16.gmra.mrb[0].mxu0 %v556
    %v1005 = vpop.f32.mrb[0].mxu0
    %v1006 = vadd.f32 %v845, %v1005
    %v1007 = vpop.f32.mrb[0].mxu0
    %v1008 = vpop.f32.mrb[0].mxu0
    %v1009 = vadd.f32 %v848, %v1008
    %v1010 = vpop.f32.mrb[0].mxu0
    %1011 = vmatprep.mubr.bf16.mxu0 0
    %1012 = vmatmul.mubr.bf16.gmra.mrb[0].mxu0 %v557
    %v1013 = vpop.f32.mrb[0].mxu0
    %v1014 = vadd.f32 %v853, %v1013
    %v1015 = vpop.f32.mrb[0].mxu0
    %v1016 = vpop.f32.mrb[0].mxu0
    %v1017 = vadd.f32 %v856, %v1016
    %v1018 = vpop.f32.mrb[0].mxu0
    %1019 = vmatprep.mubr.bf16.mxu0 0
    %1020 = vmatmul.mubr.bf16.gmra.mrb[0].mxu0 %v558
    %v1021 = vpop.f32.mrb[0].mxu0
    %v1022 = vadd.f32 %v861, %v1021
    %v1023 = vpop.f32.mrb[0].mxu0
    %v1024 = vpop.f32.mrb[0].mxu0
    %v1025 = vadd.f32 %v864, %v1024
    %v1026 = vpop.f32.mrb[0].mxu0
    %1027 = vmatprep.mubr.bf16.mxu0 0
    %1028 = vmatmul.mubr.bf16.gmra.mrb[0].mxu0 %v559
    %v1029 = vpop.f32.mrb[0].mxu0
    %v1030 = vadd.f32 %v869, %v1029
    %v1031 = vpop.f32.mrb[0].mxu0
    %v1032 = vpop.f32.mrb[0].mxu0
    %v1033 = vadd.f32 %v872, %v1032
    %v1034 = vpop.f32.mrb[0].mxu0
    %1035 = vmatprep.mubr.bf16.mxu0 0
    %1036 = vmatmul.mubr.bf16.gmra.mrb[0].mxu0 %v560
    %v1037 = vpop.f32.mrb[0].mxu0
    %v1038 = vadd.f32 %v877, %v1037
    %v1039 = vpop.f32.mrb[0].mxu0
    %v1040 = vpop.f32.mrb[0].mxu0
    %v1041 = vadd.f32 %v880, %v1040
    %v1042 = vpop.f32.mrb[0].mxu0
    %1043 = vdwg.mxu0
    %v1044 = vld [vmem:[%s11] sm:$0x1]
    %v1046 = vlaneseq
    %v1047 = vshrl.u32 %v1046, 7
    %v1048 = vsub.s32 0, %v1047
    %v1049 = vrot.slane %v1044, %v1048
    %v1051 = vadd.f32 %v982, %v1049
    %v1052 = vadd.f32 %v985, %v1049
    %v1053 = vadd.f32 %v990, %v1049
    %v1054 = vadd.f32 %v993, %v1049
    %v1055 = vadd.f32 %v998, %v1049
    %v1056 = vadd.f32 %v1001, %v1049
    %v1057 = vadd.f32 %v1006, %v1049
    %v1058 = vadd.f32 %v1009, %v1049
    %v1059 = vadd.f32 %v1014, %v1049
    %v1060 = vadd.f32 %v1017, %v1049
    %v1061 = vadd.f32 %v1022, %v1049
    %v1062 = vadd.f32 %v1025, %v1049
    %v1063 = vadd.f32 %v1030, %v1049
    %v1064 = vadd.f32 %v1033, %v1049
    %v1065 = vadd.f32 %v1038, %v1049
    %v1066 = vadd.f32 %v1041, %v1049
    %v1067 = vmax.f32 %v1051, 0.0
    %v1068 = vmax.f32 %v1052, 0.0
    %v1069 = vmax.f32 %v1053, 0.0
    %v1070 = vmax.f32 %v1054, 0.0
    %v1071 = vmax.f32 %v1055, 0.0
    %v1072 = vmax.f32 %v1056, 0.0
    %v1073 = vmax.f32 %v1057, 0.0
    %v1074 = vmax.f32 %v1058, 0.0
    %v1075 = vmax.f32 %v1059, 0.0
    %v1076 = vmax.f32 %v1060, 0.0
    %v1077 = vmax.f32 %v1061, 0.0
    %v1078 = vmax.f32 %v1062, 0.0
    %v1079 = vmax.f32 %v1063, 0.0
    %v1080 = vmax.f32 %v1064, 0.0
    %v1081 = vmax.f32 %v1065, 0.0
    %v1082 = vmax.f32 %v1066, 0.0
    %v1083 = vpack.c.bf16 %v1068, %v1067
    %v1084 = vpack.c.bf16 %v1070, %v1069
    %v1085 = vpack.c.bf16 %v1072, %v1071
    %v1086 = vpack.c.bf16 %v1074, %v1073
    %v1087 = vpack.c.bf16 %v1076, %v1075
    %v1088 = vpack.c.bf16 %v1078, %v1077
    %v1089 = vpack.c.bf16 %v1080, %v1079
    %v1090 = vpack.c.bf16 %v1082, %v1081
    %v1099 = vunpack.c.l.b16 %v225
    %v1100 = vunpack.c.l.b16 %v226
    %v1101 = vunpack.c.l.b16 %v227
    %v1102 = vunpack.c.l.b16 %v228
    %v1103 = vunpack.c.l.b16 %v229
    %v1104 = vunpack.c.l.b16 %v230
    %v1105 = vunpack.c.l.b16 %v231
    %v1106 = vunpack.c.l.b16 %v232
    %v1107 = vpack.c.b16 %v1100, %v1099
    %v1108 = vpack.c.b16 %v1102, %v1101
    %v1109 = vpack.c.b16 %v1104, %v1103
    %v1110 = vpack.c.b16 %v1106, %v1105
    %1115 = vmatprep.subr.bf16.mxu0 0
    %1116 = vmatpush1.bf16.msra.mxu0 %v1083
    %1117 = vmatprep.subr.bf16.mxu0 0
    %1118 = vmatpush1.bf16.msra.mxu0 %v1084
    %1119 = vmatprep.subr.bf16.mxu0 0
    %1120 = vmatpush1.bf16.msra.mxu0 %v1085
    %1121 = vmatprep.subr.bf16.mxu0 0
    %1122 = vmatpush1.bf16.msra.mxu0 %v1086
    %1123 = vmatprep.subr.bf16.mxu0 0
    %1124 = vmatpush1.bf16.msra.mxu0 %v1087
    %1125 = vmatprep.subr.bf16.mxu0 0
    %1126 = vmatpush1.bf16.msra.mxu0 %v1088
    %1127 = vmatprep.subr.bf16.mxu0 0
    %1128 = vmatpush1.bf16.msra.mxu0 %v1089
    %1129 = vmatprep.subr.bf16.mxu0 0
    %1130 = vmatpush1.bf16.msra.mxu0 %v1090
    %1131 = vmatprep.subr.bf16.mxu0 0
    %1132 = vmatpush1.bf16.msra.mxu0 0
    %1133 = vmatprep.subr.bf16.mxu0 0
    %1134 = vmatpush1.bf16.msra.mxu0 0
    %1135 = vmatprep.subr.bf16.mxu0 0
    %1136 = vmatpush1.bf16.msra.mxu0 0
    %1137 = vmatprep.subr.bf16.mxu0 0
    %1138 = vmatpush1.bf16.msra.mxu0 0
    %1139 = vmatprep.subr.bf16.mxu0 0
    %1140 = vmatpush1.bf16.msra.mxu0 0
    %1141 = vmatprep.subr.bf16.mxu0 0
    %1142 = vmatpush1.bf16.msra.mxu0 0
    %1143 = vmatprep.subr.bf16.mxu0 0
    %1144 = vmatpush1.bf16.msra.mxu0 0
    %1145 = vmatprep.subr.bf16.mxu0 0
    %1146 = vmatpush1.bf16.msra.mxu0 0
    %1147 = vmatprep.mubr.bf16.mxu0 0
    %1148 = vmatmul.mubr.bf16.gmra.mrb[0].mxu0 %v1107
    %v1149 = vpop.f32.mrb[0].mxu0
    %v1150 = vadd.f32 0.0, %v1149
    %v1151 = vpop.f32.mrb[0].mxu0
    %v1152 = vpop.f32.mrb[0].mxu0
    %v1153 = vadd.f32 0.0, %v1152
    %v1154 = vpop.f32.mrb[0].mxu0
    %1155 = vmatprep.mubr.bf16.mxu0 0
    %1156 = vmatmul.mubr.bf16.gmra.mrb[0].mxu0 %v1108
    %v1157 = vpop.f32.mrb[0].mxu0
    %v1158 = vadd.f32 0.0, %v1157
    %v1159 = vpop.f32.mrb[0].mxu0
    %v1160 = vpop.f32.mrb[0].mxu0
    %v1161 = vadd.f32 0.0, %v1160
    %v1162 = vpop.f32.mrb[0].mxu0
    %1163 = vmatprep.mubr.bf16.mxu0 0
    %1164 = vmatmul.mubr.bf16.gmra.mrb[0].mxu0 %v1109
    %v1165 = vpop.f32.mrb[0].mxu0
    %v1166 = vadd.f32 0.0, %v1165
    %v1167 = vpop.f32.mrb[0].mxu0
    %v1168 = vpop.f32.mrb[0].mxu0
    %v1169 = vadd.f32 0.0, %v1168
    %v1170 = vpop.f32.mrb[0].mxu0
    %1171 = vmatprep.mubr.bf16.mxu0 0
    %1172 = vmatmul.mubr.bf16.gmra.mrb[0].mxu0 %v1110
    %v1173 = vpop.f32.mrb[0].mxu0
    %v1174 = vadd.f32 0.0, %v1173
    %v1175 = vpop.f32.mrb[0].mxu0
    %v1176 = vpop.f32.mrb[0].mxu0
    %v1177 = vadd.f32 0.0, %v1176
    %v1178 = vpop.f32.mrb[0].mxu0
    %1179 = vdwg.mxu0
    %1181 = vset.pattern.permute.xlu0 0
    %1182 = vperm.xlu0 %1181, %v233
    %v1183 = vpop.permute.xlu0 %1182
    %1186 = vset.pattern.permute.xlu0 0
    %1187 = vperm.xlu0 %1186, %v234
    %v1188 = vpop.permute.xlu0 %1187
    %1191 = vset.pattern.permute.xlu0 0
    %1192 = vperm.xlu0 %1191, %v235
    %v1193 = vpop.permute.xlu0 %1192
    %1196 = vset.pattern.permute.xlu0 0
    %1197 = vperm.xlu0 %1196, %v236
    %v1198 = vpop.permute.xlu0 %1197
    %1201 = vset.pattern.permute.xlu0 0
    %1202 = vperm.xlu0 %1201, %v237
    %v1203 = vpop.permute.xlu0 %1202
    %1206 = vset.pattern.permute.xlu0 0
    %1207 = vperm.xlu0 %1206, %v238
    %v1208 = vpop.permute.xlu0 %1207
    %1211 = vset.pattern.permute.xlu0 0
    %1212 = vperm.xlu0 %1211, %v239
    %v1213 = vpop.permute.xlu0 %1212
    %1216 = vset.pattern.permute.xlu0 0
    %1217 = vperm.xlu0 %1216, %v240
    %v1218 = vpop.permute.xlu0 %1217
    %v1220 = vmul.f32 %v1150, %v1183
    %v1221 = vmul.f32 %v1153, %v1188
    %v1222 = vmul.f32 %v1158, %v1193
    %v1223 = vmul.f32 %v1161, %v1198
    %v1224 = vmul.f32 %v1166, %v1203
    %v1225 = vmul.f32 %v1169, %v1208
    %v1226 = vmul.f32 %v1174, %v1213
    %v1227 = vmul.f32 %v1177, %v1218
    %v1228 = vpack.c.bf16 %v1221, %v1220
    %v1229 = vpack.c.bf16 %v1223, %v1222
    %v1230 = vpack.c.bf16 %v1225, %v1224
    %v1231 = vpack.c.bf16 %v1227, %v1226
    %v1232 = vld [vmem:[#allocation7] sm:$0xf]
    %v1233 = vld [vmem:[#allocation7 + $0x4] sm:$0xf]
    %v1234 = vld [vmem:[#allocation7 + $0x8] sm:$0xf]
    %v1235 = vld [vmem:[#allocation7 + $0xc] sm:$0xf]
    %v1236 = vld [vmem:[#allocation7 + $0x10] sm:$0xf]
    %v1237 = vld [vmem:[#allocation7 + $0x14] sm:$0xf]
    %v1238 = vld [vmem:[#allocation7 + $0x18] sm:$0xf]
    %v1239 = vld [vmem:[#allocation7 + $0x1c] sm:$0xf]
    %v1240 = vld [vmem:[#allocation7 + $0x20] sm:$0xf]
    %v1241 = vld [vmem:[#allocation7 + $0x24] sm:$0xf]
    %v1242 = vld [vmem:[#allocation7 + $0x28] sm:$0xf]
    %v1243 = vld [vmem:[#allocation7 + $0x2c] sm:$0xf]
    %v1244 = vld [vmem:[#allocation7 + $0x30] sm:$0xf]
    %v1245 = vld [vmem:[#allocation7 + $0x34] sm:$0xf]
    %v1246 = vld [vmem:[#allocation7 + $0x38] sm:$0xf]
    %v1247 = vld [vmem:[#allocation7 + $0x3c] sm:$0xf]
    %v1248 = vld [vmem:[#allocation7 + $0x40] sm:$0xf]
    %v1249 = vld [vmem:[#allocation7 + $0x44] sm:$0xf]
    %v1250 = vld [vmem:[#allocation7 + $0x48] sm:$0xf]
    %v1251 = vld [vmem:[#allocation7 + $0x4c] sm:$0xf]
    %v1252 = vld [vmem:[#allocation7 + $0x50] sm:$0xf]
    %v1253 = vld [vmem:[#allocation7 + $0x54] sm:$0xf]
    %v1254 = vld [vmem:[#allocation7 + $0x58] sm:$0xf]
    %v1255 = vld [vmem:[#allocation7 + $0x5c] sm:$0xf]
    %v1256 = vld [vmem:[#allocation7 + $0x60] sm:$0xf]
    %v1257 = vld [vmem:[#allocation7 + $0x64] sm:$0xf]
    %v1258 = vld [vmem:[#allocation7 + $0x68] sm:$0xf]
    %v1259 = vld [vmem:[#allocation7 + $0x6c] sm:$0xf]
    %v1260 = vld [vmem:[#allocation7 + $0x70] sm:$0xf]
    %v1261 = vld [vmem:[#allocation7 + $0x74] sm:$0xf]
    %v1262 = vld [vmem:[#allocation7 + $0x78] sm:$0xf]
    %v1263 = vld [vmem:[#allocation7 + $0x7c] sm:$0xf]
    %v1264 = vld [vmem:[%s13] sm:$0x1]
    %v1266 = vlaneseq
    %v1267 = vshrl.u32 %v1266, 7
    %v1268 = vsub.s32 0, %v1267
    %v1269 = vrot.slane %v1264, %v1268
    %v1303 = vunpack.c.l.b16 %v1232
    %v1304 = vunpack.c.l.b16 %v1233
    %v1305 = vunpack.c.l.b16 %v1234
    %v1306 = vunpack.c.l.b16 %v1235
    %v1307 = vunpack.c.l.b16 %v1236
    %v1308 = vunpack.c.l.b16 %v1237
    %v1309 = vunpack.c.l.b16 %v1238
    %v1310 = vunpack.c.l.b16 %v1239
    %v1311 = vunpack.c.l.b16 %v1240
    %v1312 = vunpack.c.l.b16 %v1241
    %v1313 = vunpack.c.l.b16 %v1242
    %v1314 = vunpack.c.l.b16 %v1243
    %v1315 = vunpack.c.l.b16 %v1244
    %v1316 = vunpack.c.l.b16 %v1245
    %v1317 = vunpack.c.l.b16 %v1246
    %v1318 = vunpack.c.l.b16 %v1247
    %v1319 = vunpack.c.l.b16 %v1248
    %v1320 = vunpack.c.l.b16 %v1249
    %v1321 = vunpack.c.l.b16 %v1250
    %v1322 = vunpack.c.l.b16 %v1251
    %v1323 = vunpack.c.l.b16 %v1252
    %v1324 = vunpack.c.l.b16 %v1253
    %v1325 = vunpack.c.l.b16 %v1254
    %v1326 = vunpack.c.l.b16 %v1255
    %v1327 = vunpack.c.l.b16 %v1256
    %v1328 = vunpack.c.l.b16 %v1257
    %v1329 = vunpack.c.l.b16 %v1258
    %v1330 = vunpack.c.l.b16 %v1259
    %v1331 = vunpack.c.l.b16 %v1260
    %v1332 = vunpack.c.l.b16 %v1261
    %v1333 = vunpack.c.l.b16 %v1262
    %v1334 = vunpack.c.l.b16 %v1263
    %v1335 = vpack.c.b16 %v1304, %v1303
    %v1336 = vpack.c.b16 %v1306, %v1305
    %v1337 = vpack.c.b16 %v1308, %v1307
    %v1338 = vpack.c.b16 %v1310, %v1309
    %v1339 = vpack.c.b16 %v1312, %v1311
    %v1340 = vpack.c.b16 %v1314, %v1313
    %v1341 = vpack.c.b16 %v1316, %v1315
    %v1342 = vpack.c.b16 %v1318, %v1317
    %v1343 = vpack.c.b16 %v1320, %v1319
    %v1344 = vpack.c.b16 %v1322, %v1321
    %v1345 = vpack.c.b16 %v1324, %v1323
    %v1346 = vpack.c.b16 %v1326, %v1325
    %v1347 = vpack.c.b16 %v1328, %v1327
    %v1348 = vpack.c.b16 %v1330, %v1329
    %v1349 = vpack.c.b16 %v1332, %v1331
    %v1350 = vpack.c.b16 %v1334, %v1333
    %1367 = vmatprep.subr.bf16.mxu0 0
    %1368 = vmatpush1.bf16.msra.mxu0 %v1335
    %1369 = vmatprep.subr.bf16.mxu0 0
    %1370 = vmatpush1.bf16.msra.mxu0 %v1336
    %1371 = vmatprep.subr.bf16.mxu0 0
    %1372 = vmatpush1.bf16.msra.mxu0 %v1337
    %1373 = vmatprep.subr.bf16.mxu0 0
    %1374 = vmatpush1.bf16.msra.mxu0 %v1338
    %1375 = vmatprep.subr.bf16.mxu0 0
    %1376 = vmatpush1.bf16.msra.mxu0 %v1339
    %1377 = vmatprep.subr.bf16.mxu0 0
    %1378 = vmatpush1.bf16.msra.mxu0 %v1340
    %1379 = vmatprep.subr.bf16.mxu0 0
    %1380 = vmatpush1.bf16.msra.mxu0 %v1341
    %1381 = vmatprep.subr.bf16.mxu0 0
    %1382 = vmatpush1.bf16.msra.mxu0 %v1342
    %1383 = vmatprep.subr.bf16.mxu0 0
    %1384 = vmatpush1.bf16.msra.mxu0 %v1343
    %1385 = vmatprep.subr.bf16.mxu0 0
    %1386 = vmatpush1.bf16.msra.mxu0 %v1344
    %1387 = vmatprep.subr.bf16.mxu0 0
    %1388 = vmatpush1.bf16.msra.mxu0 %v1345
    %1389 = vmatprep.subr.bf16.mxu0 0
    %1390 = vmatpush1.bf16.msra.mxu0 %v1346
    %1391 = vmatprep.subr.bf16.mxu0 0
    %1392 = vmatpush1.bf16.msra.mxu0 %v1347
    %1393 = vmatprep.subr.bf16.mxu0 0
    %1394 = vmatpush1.bf16.msra.mxu0 %v1348
    %1395 = vmatprep.subr.bf16.mxu0 0
    %1396 = vmatpush1.bf16.msra.mxu0 %v1349
    %1397 = vmatprep.subr.bf16.mxu0 0
    %1398 = vmatpush1.bf16.msra.mxu0 %v1350
    %1399 = vmatprep.mubr.bf16.mxu0 %v1228
    %1400 = vmatmul.mubr.bf16.gmra.mrb[0].mxu0 %v549
    %v1401 = vpop.f32.mrb[0].mxu0
    %v1402 = vadd.f32 %v1269, %v1401
    %v1403 = vpop.f32.mrb[0].mxu0
    %v1404 = vpop.f32.mrb[0].mxu0
    %v1405 = vadd.f32 %v1269, %v1404
    %v1406 = vpop.f32.mrb[0].mxu0
    %1407 = vmatprep.mubr.bf16.mxu0 %v1229
    %1408 = vmatmul.mubr.bf16.gmra.mrb[0].mxu0 %v550
    %v1409 = vpop.f32.mrb[0].mxu0
    %v1410 = vadd.f32 %v1269, %v1409
    %v1411 = vpop.f32.mrb[0].mxu0
    %v1412 = vpop.f32.mrb[0].mxu0
    %v1413 = vadd.f32 %v1269, %v1412
    %v1414 = vpop.f32.mrb[0].mxu0
    %1415 = vmatprep.mubr.bf16.mxu0 %v1230
    %1416 = vmatmul.mubr.bf16.gmra.mrb[0].mxu0 %v551
    %v1417 = vpop.f32.mrb[0].mxu0
    %v1418 = vadd.f32 %v1269, %v1417
    %v1419 = vpop.f32.mrb[0].mxu0
    %v1420 = vpop.f32.mrb[0].mxu0
    %v1421 = vadd.f32 %v1269, %v1420
    %v1422 = vpop.f32.mrb[0].mxu0
    %1423 = vmatprep.mubr.bf16.mxu0 %v1231
    %1424 = vmatmul.mubr.bf16.gmra.mrb[0].mxu0 %v552
    %v1425 = vpop.f32.mrb[0].mxu0
    %v1426 = vadd.f32 %v1269, %v1425
    %v1427 = vpop.f32.mrb[0].mxu0
    %v1428 = vpop.f32.mrb[0].mxu0
    %v1429 = vadd.f32 %v1269, %v1428
    %v1430 = vpop.f32.mrb[0].mxu0
    %1431 = vdwg.mxu0
    %v1432 = vmax.f32 %v1402, 0.0
    %v1433 = vmax.f32 %v1405, 0.0
    %v1434 = vmax.f32 %v1410, 0.0
    %v1435 = vmax.f32 %v1413, 0.0
    %v1436 = vmax.f32 %v1418, 0.0
    %v1437 = vmax.f32 %v1421, 0.0
    %v1438 = vmax.f32 %v1426, 0.0
    %v1439 = vmax.f32 %v1429, 0.0
    %v1440 = vpack.c.bf16 %v1433, %v1432
    %v1441 = vpack.c.bf16 %v1435, %v1434
    %v1442 = vpack.c.bf16 %v1437, %v1436
    %v1443 = vpack.c.bf16 %v1439, %v1438
    %v1444 = vld [vmem:[#allocation10] sm:$0xff]
    %v1445 = vld [vmem:[#allocation10 + $0x8] sm:$0xff]
    %v1446 = vld [vmem:[#allocation10 + $0x10] sm:$0xff]
    %v1447 = vld [vmem:[#allocation10 + $0x18] sm:$0xff]
    %v1448 = vld [vmem:[#allocation10 + $0x20] sm:$0xff]
    %v1449 = vld [vmem:[#allocation10 + $0x28] sm:$0xff]
    %v1450 = vld [vmem:[#allocation10 + $0x30] sm:$0xff]
    %v1451 = vld [vmem:[#allocation10 + $0x38] sm:$0xff]
    %v1452 = vld [vmem:[#allocation10 + $0x40] sm:$0xff]
    %v1453 = vld [vmem:[#allocation10 + $0x48] sm:$0xff]
    %v1454 = vld [vmem:[#allocation10 + $0x50] sm:$0xff]
    %v1455 = vld [vmem:[#allocation10 + $0x58] sm:$0xff]
    %v1456 = vld [vmem:[#allocation10 + $0x60] sm:$0xff]
    %v1457 = vld [vmem:[#allocation10 + $0x68] sm:$0xff]
    %v1458 = vld [vmem:[#allocation10 + $0x70] sm:$0xff]
    %v1459 = vld [vmem:[#allocation10 + $0x78] sm:$0xff]
    %v1476 = vunpack.c.l.b16 %v1444
    %v1477 = vunpack.c.h.b16 %v1444
    %v1478 = vunpack.c.l.b16 %v1445
    %v1479 = vunpack.c.h.b16 %v1445
    %v1480 = vunpack.c.l.b16 %v1446
    %v1481 = vunpack.c.h.b16 %v1446
    %v1482 = vunpack.c.l.b16 %v1447
    %v1483 = vunpack.c.h.b16 %v1447
    %v1484 = vunpack.c.l.b16 %v1448
    %v1485 = vunpack.c.h.b16 %v1448
    %v1486 = vunpack.c.l.b16 %v1449
    %v1487 = vunpack.c.h.b16 %v1449
    %v1488 = vunpack.c.l.b16 %v1450
    %v1489 = vunpack.c.h.b16 %v1450
    %v1490 = vunpack.c.l.b16 %v1451
    %v1491 = vunpack.c.h.b16 %v1451
    %v1492 = vunpack.c.l.b16 %v1452
    %v1493 = vunpack.c.h.b16 %v1452
    %v1494 = vunpack.c.l.b16 %v1453
    %v1495 = vunpack.c.h.b16 %v1453
    %v1496 = vunpack.c.l.b16 %v1454
    %v1497 = vunpack.c.h.b16 %v1454
    %v1498 = vunpack.c.l.b16 %v1455
    %v1499 = vunpack.c.h.b16 %v1455
    %v1500 = vunpack.c.l.b16 %v1456
    %v1501 = vunpack.c.h.b16 %v1456
    %v1502 = vunpack.c.l.b16 %v1457
    %v1503 = vunpack.c.h.b16 %v1457
    %v1504 = vunpack.c.l.b16 %v1458
    %v1505 = vunpack.c.h.b16 %v1458
    %v1506 = vunpack.c.l.b16 %v1459
    %v1507 = vunpack.c.h.b16 %v1459
    %v1508 = vpack.c.b16 %v1478, %v1476
    %v1509 = vpack.c.b16 %v1479, %v1477
    %v1510 = vpack.c.b16 %v1482, %v1480
    %v1511 = vpack.c.b16 %v1483, %v1481
    %v1512 = vpack.c.b16 %v1486, %v1484
    %v1513 = vpack.c.b16 %v1487, %v1485
    %v1514 = vpack.c.b16 %v1490, %v1488
    %v1515 = vpack.c.b16 %v1491, %v1489
    %v1516 = vpack.c.b16 %v1494, %v1492
    %v1517 = vpack.c.b16 %v1495, %v1493
    %v1518 = vpack.c.b16 %v1498, %v1496
    %v1519 = vpack.c.b16 %v1499, %v1497
    %v1520 = vpack.c.b16 %v1502, %v1500
    %v1521 = vpack.c.b16 %v1503, %v1501
    %v1522 = vpack.c.b16 %v1506, %v1504
    %v1523 = vpack.c.b16 %v1507, %v1505
    %1540 = vmatprep.subr.bf16.mxu0 %v1509
    %1541 = vmatpush1.bf16.msra.mxu0 %v1508
    %1542 = vmatprep.subr.bf16.mxu0 %v1511
    %1543 = vmatpush1.bf16.msra.mxu0 %v1510
    %1544 = vmatprep.subr.bf16.mxu0 %v1513
    %1545 = vmatpush1.bf16.msra.mxu0 %v1512
    %1546 = vmatprep.subr.bf16.mxu0 %v1515
    %1547 = vmatpush1.bf16.msra.mxu0 %v1514
    %1548 = vmatprep.subr.bf16.mxu0 %v1517
    %1549 = vmatpush1.bf16.msra.mxu0 %v1516
    %1550 = vmatprep.subr.bf16.mxu0 %v1519
    %1551 = vmatpush1.bf16.msra.mxu0 %v1518
    %1552 = vmatprep.subr.bf16.mxu0 %v1521
    %1553 = vmatpush1.bf16.msra.mxu0 %v1520
    %1554 = vmatprep.subr.bf16.mxu0 %v1523
    %1555 = vmatpush1.bf16.msra.mxu0 %v1522
    %1556 = vmatprep.subr.bf16.mxu0 0
    %1557 = vmatpush1.bf16.msra.mxu0 0
    %1558 = vmatprep.subr.bf16.mxu0 0
    %1559 = vmatpush1.bf16.msra.mxu0 0
    %1560 = vmatprep.subr.bf16.mxu0 0
    %1561 = vmatpush1.bf16.msra.mxu0 0
    %1562 = vmatprep.subr.bf16.mxu0 0
    %1563 = vmatpush1.bf16.msra.mxu0 0
    %1564 = vmatprep.subr.bf16.mxu0 0
    %1565 = vmatpush1.bf16.msra.mxu0 0
    %1566 = vmatprep.subr.bf16.mxu0 0
    %1567 = vmatpush1.bf16.msra.mxu0 0
    %1568 = vmatprep.subr.bf16.mxu0 0
    %1569 = vmatpush1.bf16.msra.mxu0 0
    %1570 = vmatprep.subr.bf16.mxu0 0
    %1571 = vmatpush1.bf16.msra.mxu0 0
    %1572 = vmatprep.mubr.bf16.mxu0 0
    %1573 = vmatmul.mubr.bf16.gmra.mrb[0].mxu0 %v1440
    %v1574 = vpop.f32.mrb[0].mxu0
    %v1575 = vadd.f32 0.0, %v1574
    %v1576 = vpop.f32.mrb[0].mxu0
    %v1577 = vadd.f32 0.0, %v1576
    %v1578 = vpop.f32.mrb[0].mxu0
    %v1579 = vadd.f32 0.0, %v1578
    %v1580 = vpop.f32.mrb[0].mxu0
    %v1581 = vadd.f32 0.0, %v1580
    %1582 = vmatprep.mubr.bf16.mxu0 0
    %1583 = vmatmul.mubr.bf16.gmra.mrb[0].mxu0 %v1441
    %v1584 = vpop.f32.mrb[0].mxu0
    %v1585 = vadd.f32 0.0, %v1584
    %v1586 = vpop.f32.mrb[0].mxu0
    %v1587 = vadd.f32 0.0, %v1586
    %v1588 = vpop.f32.mrb[0].mxu0
    %v1589 = vadd.f32 0.0, %v1588
    %v1590 = vpop.f32.mrb[0].mxu0
    %v1591 = vadd.f32 0.0, %v1590
    %1592 = vmatprep.mubr.bf16.mxu0 0
    %1593 = vmatmul.mubr.bf16.gmra.mrb[0].mxu0 %v1442
    %v1594 = vpop.f32.mrb[0].mxu0
    %v1595 = vadd.f32 0.0, %v1594
    %v1596 = vpop.f32.mrb[0].mxu0
    %v1597 = vadd.f32 0.0, %v1596
    %v1598 = vpop.f32.mrb[0].mxu0
    %v1599 = vadd.f32 0.0, %v1598
    %v1600 = vpop.f32.mrb[0].mxu0
    %v1601 = vadd.f32 0.0, %v1600
    %1602 = vmatprep.mubr.bf16.mxu0 0
    %1603 = vmatmul.mubr.bf16.gmra.mrb[0].mxu0 %v1443
    %v1604 = vpop.f32.mrb[0].mxu0
    %v1605 = vadd.f32 0.0, %v1604
    %v1606 = vpop.f32.mrb[0].mxu0
    %v1607 = vadd.f32 0.0, %v1606
    %v1608 = vpop.f32.mrb[0].mxu0
    %v1609 = vadd.f32 0.0, %v1608
    %v1610 = vpop.f32.mrb[0].mxu0
    %v1611 = vadd.f32 0.0, %v1610
    %1612 = vdwg.mxu0
    %v1613 = vpack.c.bf16 %v1579, %v1575
    %v1614 = vpack.c.bf16 %v1589, %v1585
    %v1615 = vpack.c.bf16 %v1599, %v1595
    %v1616 = vpack.c.bf16 %v1609, %v1605
    %v1617 = vpack.c.bf16 %v1581, %v1577
    %v1618 = vpack.c.bf16 %v1591, %v1587
    %v1619 = vpack.c.bf16 %v1601, %v1597
    %v1620 = vpack.c.bf16 %v1611, %v1607
    %1621 = vmatprep.subr.bf16.mxu0 0
    %1622 = vmatpush1.bf16.msra.mxu0 %v1613
    %1623 = vmatprep.subr.bf16.mxu0 0
    %1624 = vmatpush1.bf16.msra.mxu0 %v1614
    %1625 = vmatprep.subr.bf16.mxu0 0
    %1626 = vmatpush1.bf16.msra.mxu0 %v1615
    %1627 = vmatprep.subr.bf16.mxu0 0
    %1628 = vmatpush1.bf16.msra.mxu0 %v1616
    %1629 = vmatprep.subr.bf16.mxu0 0
    %1630 = vmatpush1.bf16.msra.mxu0 %v1617
    %1631 = vmatprep.subr.bf16.mxu0 0
    %1632 = vmatpush1.bf16.msra.mxu0 %v1618
    %1633 = vmatprep.subr.bf16.mxu0 0
    %1634 = vmatpush1.bf16.msra.mxu0 %v1619
    %1635 = vmatprep.subr.bf16.mxu0 0
    %1636 = vmatpush1.bf16.msra.mxu0 %v1620
    %1637 = vmatprep.subr.bf16.mxu0 0
    %1638 = vmatpush1.bf16.msra.mxu0 0
    %1639 = vmatprep.subr.bf16.mxu0 0
    %1640 = vmatpush1.bf16.msra.mxu0 0
    %1641 = vmatprep.subr.bf16.mxu0 0
    %1642 = vmatpush1.bf16.msra.mxu0 0
    %1643 = vmatprep.subr.bf16.mxu0 0
    %1644 = vmatpush1.bf16.msra.mxu0 0
    %1645 = vmatprep.subr.bf16.mxu0 0
    %1646 = vmatpush1.bf16.msra.mxu0 0
    %1647 = vmatprep.subr.bf16.mxu0 0
    %1648 = vmatpush1.bf16.msra.mxu0 0
    %1649 = vmatprep.subr.bf16.mxu0 0
    %1650 = vmatpush1.bf16.msra.mxu0 0
    %1651 = vmatprep.subr.bf16.mxu0 0
    %1652 = vmatpush1.bf16.msra.mxu0 0
    %1653 = vmatprep.mubr.bf16.mxu0 0
    %1654 = vmatmul.mubr.bf16.gmra.mrb[0].mxu0 %v770
    %v1655 = vpop.f32.mrb[0].mxu0
    %v1656 = vadd.f32 0.0, %v1655
    %v1657 = vpop.f32.mrb[0].mxu0
    %v1658 = vpop.f32.mrb[0].mxu0
    %v1659 = vadd.f32 0.0, %v1658
    %v1660 = vpop.f32.mrb[0].mxu0
    %1661 = vmatprep.mubr.bf16.mxu0 0
    %1662 = vmatmul.mubr.bf16.gmra.mrb[0].mxu0 %v771
    %v1663 = vpop.f32.mrb[0].mxu0
    %v1664 = vadd.f32 0.0, %v1663
    %v1665 = vpop.f32.mrb[0].mxu0
    %v1666 = vpop.f32.mrb[0].mxu0
    %v1667 = vadd.f32 0.0, %v1666
    %v1668 = vpop.f32.mrb[0].mxu0
    %1669 = vmatprep.mubr.bf16.mxu0 0
    %1670 = vmatmul.mubr.bf16.gmra.mrb[0].mxu0 %v772
    %v1671 = vpop.f32.mrb[0].mxu0
    %v1672 = vadd.f32 0.0, %v1671
    %v1673 = vpop.f32.mrb[0].mxu0
    %v1674 = vpop.f32.mrb[0].mxu0
    %v1675 = vadd.f32 0.0, %v1674
    %v1676 = vpop.f32.mrb[0].mxu0
    %1677 = vmatprep.mubr.bf16.mxu0 0
    %1678 = vmatmul.mubr.bf16.gmra.mrb[0].mxu0 %v773
    %v1679 = vpop.f32.mrb[0].mxu0
    %v1680 = vadd.f32 0.0, %v1679
    %v1681 = vpop.f32.mrb[0].mxu0
    %v1682 = vpop.f32.mrb[0].mxu0
    %v1683 = vadd.f32 0.0, %v1682
    %v1684 = vpop.f32.mrb[0].mxu0
    %1685 = vmatprep.mubr.bf16.mxu0 0
    %1686 = vmatmul.mubr.bf16.gmra.mrb[0].mxu0 %v774
    %v1687 = vpop.f32.mrb[0].mxu0
    %v1688 = vadd.f32 0.0, %v1687
    %v1689 = vpop.f32.mrb[0].mxu0
    %v1690 = vpop.f32.mrb[0].mxu0
    %v1691 = vadd.f32 0.0, %v1690
    %v1692 = vpop.f32.mrb[0].mxu0
    %1693 = vmatprep.mubr.bf16.mxu0 0
    %1694 = vmatmul.mubr.bf16.gmra.mrb[0].mxu0 %v775
    %v1695 = vpop.f32.mrb[0].mxu0
    %v1696 = vadd.f32 0.0, %v1695
    %v1697 = vpop.f32.mrb[0].mxu0
    %v1698 = vpop.f32.mrb[0].mxu0
    %v1699 = vadd.f32 0.0, %v1698
    %v1700 = vpop.f32.mrb[0].mxu0
    %1701 = vmatprep.mubr.bf16.mxu0 0
    %1702 = vmatmul.mubr.bf16.gmra.mrb[0].mxu0 %v776
    %v1703 = vpop.f32.mrb[0].mxu0
    %v1704 = vadd.f32 0.0, %v1703
    %v1705 = vpop.f32.mrb[0].mxu0
    %v1706 = vpop.f32.mrb[0].mxu0
    %v1707 = vadd.f32 0.0, %v1706
    %v1708 = vpop.f32.mrb[0].mxu0
    %1709 = vmatprep.mubr.bf16.mxu0 0
    %1710 = vmatmul.mubr.bf16.gmra.mrb[0].mxu0 %v777
    %v1711 = vpop.f32.mrb[0].mxu0
    %v1712 = vadd.f32 0.0, %v1711
    %v1713 = vpop.f32.mrb[0].mxu0
    %v1714 = vpop.f32.mrb[0].mxu0
    %v1715 = vadd.f32 0.0, %v1714
    %v1716 = vpop.f32.mrb[0].mxu0
    %1717 = vdwg.mxu0
    %v1718 = vld [vmem:[#allocation8] sm:$0xf]
    %v1719 = vld [vmem:[#allocation8 + $0x4] sm:$0xf]
    %v1720 = vld [vmem:[#allocation8 + $0x8] sm:$0xf]
    %v1721 = vld [vmem:[#allocation8 + $0xc] sm:$0xf]
    %v1722 = vld [vmem:[#allocation8 + $0x10] sm:$0xf]
    %v1723 = vld [vmem:[#allocation8 + $0x14] sm:$0xf]
    %v1724 = vld [vmem:[#allocation8 + $0x18] sm:$0xf]
    %v1725 = vld [vmem:[#allocation8 + $0x1c] sm:$0xf]
    %v1726 = vld [vmem:[#allocation8 + $0x20] sm:$0xf]
    %v1727 = vld [vmem:[#allocation8 + $0x24] sm:$0xf]
    %v1728 = vld [vmem:[#allocation8 + $0x28] sm:$0xf]
    %v1729 = vld [vmem:[#allocation8 + $0x2c] sm:$0xf]
    %v1730 = vld [vmem:[#allocation8 + $0x30] sm:$0xf]
    %v1731 = vld [vmem:[#allocation8 + $0x34] sm:$0xf]
    %v1732 = vld [vmem:[#allocation8 + $0x38] sm:$0xf]
    %v1733 = vld [vmem:[#allocation8 + $0x3c] sm:$0xf]
    %v1750 = vunpack.c.l.b16 %v1718
    %v1751 = vunpack.c.l.b16 %v1719
    %v1752 = vunpack.c.l.b16 %v1720
    %v1753 = vunpack.c.l.b16 %v1721
    %v1754 = vunpack.c.l.b16 %v1722
    %v1755 = vunpack.c.l.b16 %v1723
    %v1756 = vunpack.c.l.b16 %v1724
    %v1757 = vunpack.c.l.b16 %v1725
    %v1758 = vunpack.c.l.b16 %v1726
    %v1759 = vunpack.c.l.b16 %v1727
    %v1760 = vunpack.c.l.b16 %v1728
    %v1761 = vunpack.c.l.b16 %v1729
    %v1762 = vunpack.c.l.b16 %v1730
    %v1763 = vunpack.c.l.b16 %v1731
    %v1764 = vunpack.c.l.b16 %v1732
    %v1765 = vunpack.c.l.b16 %v1733
    %v1766 = vpack.c.b16 %v1751, %v1750
    %v1767 = vpack.c.b16 %v1753, %v1752
    %v1768 = vpack.c.b16 %v1755, %v1754
    %v1769 = vpack.c.b16 %v1757, %v1756
    %v1770 = vpack.c.b16 %v1759, %v1758
    %v1771 = vpack.c.b16 %v1761, %v1760
    %v1772 = vpack.c.b16 %v1763, %v1762
    %v1773 = vpack.c.b16 %v1765, %v1764
    %1782 = vmatprep.subr.bf16.mxu0 0
    %1783 = vmatpush1.bf16.msra.mxu0 %v1766
    %1784 = vmatprep.subr.bf16.mxu0 0
    %1785 = vmatpush1.bf16.msra.mxu0 %v1767
    %1786 = vmatprep.subr.bf16.mxu0 0
    %1787 = vmatpush1.bf16.msra.mxu0 %v1768
    %1788 = vmatprep.subr.bf16.mxu0 0
    %1789 = vmatpush1.bf16.msra.mxu0 %v1769
    %1790 = vmatprep.subr.bf16.mxu0 0
    %1791 = vmatpush1.bf16.msra.mxu0 %v1770
    %1792 = vmatprep.subr.bf16.mxu0 0
    %1793 = vmatpush1.bf16.msra.mxu0 %v1771
    %1794 = vmatprep.subr.bf16.mxu0 0
    %1795 = vmatpush1.bf16.msra.mxu0 %v1772
    %1796 = vmatprep.subr.bf16.mxu0 0
    %1797 = vmatpush1.bf16.msra.mxu0 %v1773
    %1798 = vmatprep.subr.bf16.mxu0 0
    %1799 = vmatpush1.bf16.msra.mxu0 0
    %1800 = vmatprep.subr.bf16.mxu0 0
    %1801 = vmatpush1.bf16.msra.mxu0 0
    %1802 = vmatprep.subr.bf16.mxu0 0
    %1803 = vmatpush1.bf16.msra.mxu0 0
    %1804 = vmatprep.subr.bf16.mxu0 0
    %1805 = vmatpush1.bf16.msra.mxu0 0
    %1806 = vmatprep.subr.bf16.mxu0 0
    %1807 = vmatpush1.bf16.msra.mxu0 0
    %1808 = vmatprep.subr.bf16.mxu0 0
    %1809 = vmatpush1.bf16.msra.mxu0 0
    %1810 = vmatprep.subr.bf16.mxu0 0
    %1811 = vmatpush1.bf16.msra.mxu0 0
    %1812 = vmatprep.subr.bf16.mxu0 0
    %1813 = vmatpush1.bf16.msra.mxu0 0
    %1814 = vmatprep.mubr.bf16.mxu0 0
    %1815 = vmatmul.mubr.bf16.gmra.mrb[0].mxu0 %v1083
    %v1816 = vpop.f32.mrb[0].mxu0
    %v1817 = vadd.f32 %v1656, %v1816
    %v1818 = vpop.f32.mrb[0].mxu0
    %v1819 = vpop.f32.mrb[0].mxu0
    %v1820 = vadd.f32 %v1659, %v1819
    %v1821 = vpop.f32.mrb[0].mxu0
    %1822 = vmatprep.mubr.bf16.mxu0 0
    %1823 = vmatmul.mubr.bf16.gmra.mrb[0].mxu0 %v1084
    %v1824 = vpop.f32.mrb[0].mxu0
    %v1825 = vadd.f32 %v1664, %v1824
    %v1826 = vpop.f32.mrb[0].mxu0
    %v1827 = vpop.f32.mrb[0].mxu0
    %v1828 = vadd.f32 %v1667, %v1827
    %v1829 = vpop.f32.mrb[0].mxu0
    %1830 = vmatprep.mubr.bf16.mxu0 0
    %1831 = vmatmul.mubr.bf16.gmra.mrb[0].mxu0 %v1085
    %v1832 = vpop.f32.mrb[0].mxu0
    %v1833 = vadd.f32 %v1672, %v1832
    %v1834 = vpop.f32.mrb[0].mxu0
    %v1835 = vpop.f32.mrb[0].mxu0
    %v1836 = vadd.f32 %v1675, %v1835
    %v1837 = vpop.f32.mrb[0].mxu0
    %1838 = vmatprep.mubr.bf16.mxu0 0
    %1839 = vmatmul.mubr.bf16.gmra.mrb[0].mxu0 %v1086
    %v1840 = vpop.f32.mrb[0].mxu0
    %v1841 = vadd.f32 %v1680, %v1840
    %v1842 = vpop.f32.mrb[0].mxu0
    %v1843 = vpop.f32.mrb[0].mxu0
    %v1844 = vadd.f32 %v1683, %v1843
    %v1845 = vpop.f32.mrb[0].mxu0
    %1846 = vmatprep.mubr.bf16.mxu0 0
    %1847 = vmatmul.mubr.bf16.gmra.mrb[0].mxu0 %v1087
    %v1848 = vpop.f32.mrb[0].mxu0
    %v1849 = vadd.f32 %v1688, %v1848
    %v1850 = vpop.f32.mrb[0].mxu0
    %v1851 = vpop.f32.mrb[0].mxu0
    %v1852 = vadd.f32 %v1691, %v1851
    %v1853 = vpop.f32.mrb[0].mxu0
    %1854 = vmatprep.mubr.bf16.mxu0 0
    %1855 = vmatmul.mubr.bf16.gmra.mrb[0].mxu0 %v1088
    %v1856 = vpop.f32.mrb[0].mxu0
    %v1857 = vadd.f32 %v1696, %v1856
    %v1858 = vpop.f32.mrb[0].mxu0
    %v1859 = vpop.f32.mrb[0].mxu0
    %v1860 = vadd.f32 %v1699, %v1859
    %v1861 = vpop.f32.mrb[0].mxu0
    %1862 = vmatprep.mubr.bf16.mxu0 0
    %1863 = vmatmul.mubr.bf16.gmra.mrb[0].mxu0 %v1089
    %v1864 = vpop.f32.mrb[0].mxu0
    %v1865 = vadd.f32 %v1704, %v1864
    %v1866 = vpop.f32.mrb[0].mxu0
    %v1867 = vpop.f32.mrb[0].mxu0
    %v1868 = vadd.f32 %v1707, %v1867
    %v1869 = vpop.f32.mrb[0].mxu0
    %1870 = vmatprep.mubr.bf16.mxu0 0
    %1871 = vmatmul.mubr.bf16.gmra.mrb[0].mxu0 %v1090
    %v1872 = vpop.f32.mrb[0].mxu0
    %v1873 = vadd.f32 %v1712, %v1872
    %v1874 = vpop.f32.mrb[0].mxu0
    %v1875 = vpop.f32.mrb[0].mxu0
    %v1876 = vadd.f32 %v1715, %v1875
    %v1877 = vpop.f32.mrb[0].mxu0
    %1878 = vdwg.mxu0
    %v1879 = vld [vmem:[%s16] sm:$0x1]
    %v1881 = vlaneseq
    %v1882 = vshrl.u32 %v1881, 7
    %v1883 = vsub.s32 0, %v1882
    %v1884 = vrot.slane %v1879, %v1883
    %v1886 = vadd.f32 %v1817, %v1884
    %v1887 = vadd.f32 %v1820, %v1884
    %v1888 = vadd.f32 %v1825, %v1884
    %v1889 = vadd.f32 %v1828, %v1884
    %v1890 = vadd.f32 %v1833, %v1884
    %v1891 = vadd.f32 %v1836, %v1884
    %v1892 = vadd.f32 %v1841, %v1884
    %v1893 = vadd.f32 %v1844, %v1884
    %v1894 = vadd.f32 %v1849, %v1884
    %v1895 = vadd.f32 %v1852, %v1884
    %v1896 = vadd.f32 %v1857, %v1884
    %v1897 = vadd.f32 %v1860, %v1884
    %v1898 = vadd.f32 %v1865, %v1884
    %v1899 = vadd.f32 %v1868, %v1884
    %v1900 = vadd.f32 %v1873, %v1884
    %v1901 = vadd.f32 %v1876, %v1884
    %v1902 = vmax.f32 %v1886, 0.0
    %v1903 = vmax.f32 %v1887, 0.0
    %v1904 = vmax.f32 %v1888, 0.0
    %v1905 = vmax.f32 %v1889, 0.0
    %v1906 = vmax.f32 %v1890, 0.0
    %v1907 = vmax.f32 %v1891, 0.0
    %v1908 = vmax.f32 %v1892, 0.0
    %v1909 = vmax.f32 %v1893, 0.0
    %v1910 = vmax.f32 %v1894, 0.0
    %v1911 = vmax.f32 %v1895, 0.0
    %v1912 = vmax.f32 %v1896, 0.0
    %v1913 = vmax.f32 %v1897, 0.0
    %v1914 = vmax.f32 %v1898, 0.0
    %v1915 = vmax.f32 %v1899, 0.0
    %v1916 = vmax.f32 %v1900, 0.0
    %v1917 = vmax.f32 %v1901, 0.0
    %v1918 = vpack.c.bf16 %v1903, %v1902
    %v1919 = vpack.c.bf16 %v1905, %v1904
    %v1920 = vpack.c.bf16 %v1907, %v1906
    %v1921 = vpack.c.bf16 %v1909, %v1908
    %v1922 = vpack.c.bf16 %v1911, %v1910
    %v1923 = vpack.c.bf16 %v1913, %v1912
    %v1924 = vpack.c.bf16 %v1915, %v1914
    %v1925 = vpack.c.bf16 %v1917, %v1916
    %1926 = vmatprep.subr.bf16.mxu0 0
    %1927 = vmatpush1.bf16.msra.mxu0 %v1918
    %1928 = vmatprep.subr.bf16.mxu0 0
    %1929 = vmatpush1.bf16.msra.mxu0 %v1919
    %1930 = vmatprep.subr.bf16.mxu0 0
    %1931 = vmatpush1.bf16.msra.mxu0 %v1920
    %1932 = vmatprep.subr.bf16.mxu0 0
    %1933 = vmatpush1.bf16.msra.mxu0 %v1921
    %1934 = vmatprep.subr.bf16.mxu0 0
    %1935 = vmatpush1.bf16.msra.mxu0 %v1922
    %1936 = vmatprep.subr.bf16.mxu0 0
    %1937 = vmatpush1.bf16.msra.mxu0 %v1923
    %1938 = vmatprep.subr.bf16.mxu0 0
    %1939 = vmatpush1.bf16.msra.mxu0 %v1924
    %1940 = vmatprep.subr.bf16.mxu0 0
    %1941 = vmatpush1.bf16.msra.mxu0 %v1925
    %1942 = vmatprep.subr.bf16.mxu0 0
    %1943 = vmatpush1.bf16.msra.mxu0 0
    %1944 = vmatprep.subr.bf16.mxu0 0
    %1945 = vmatpush1.bf16.msra.mxu0 0
    %1946 = vmatprep.subr.bf16.mxu0 0
    %1947 = vmatpush1.bf16.msra.mxu0 0
    %1948 = vmatprep.subr.bf16.mxu0 0
    %1949 = vmatpush1.bf16.msra.mxu0 0
    %1950 = vmatprep.subr.bf16.mxu0 0
    %1951 = vmatpush1.bf16.msra.mxu0 0
    %1952 = vmatprep.subr.bf16.mxu0 0
    %1953 = vmatpush1.bf16.msra.mxu0 0
    %1954 = vmatprep.subr.bf16.mxu0 0
    %1955 = vmatpush1.bf16.msra.mxu0 0
    %1956 = vmatprep.subr.bf16.mxu0 0
    %1957 = vmatpush1.bf16.msra.mxu0 0
    %1958 = vmatprep.mubr.bf16.mxu0 0
    %1959 = vmatmul.mubr.bf16.gmra.mrb[0].mxu0 %v1107
    %v1960 = vpop.f32.mrb[0].mxu0
    %v1961 = vadd.f32 0.0, %v1960
    %v1962 = vpop.f32.mrb[0].mxu0
    %v1963 = vpop.f32.mrb[0].mxu0
    %v1964 = vadd.f32 0.0, %v1963
    %v1965 = vpop.f32.mrb[0].mxu0
    %1966 = vmatprep.mubr.bf16.mxu0 0
    %1967 = vmatmul.mubr.bf16.gmra.mrb[0].mxu0 %v1108
    %v1968 = vpop.f32.mrb[0].mxu0
    %v1969 = vadd.f32 0.0, %v1968
    %v1970 = vpop.f32.mrb[0].mxu0
    %v1971 = vpop.f32.mrb[0].mxu0
    %v1972 = vadd.f32 0.0, %v1971
    %v1973 = vpop.f32.mrb[0].mxu0
    %1974 = vmatprep.mubr.bf16.mxu0 0
    %1975 = vmatmul.mubr.bf16.gmra.mrb[0].mxu0 %v1109
    %v1976 = vpop.f32.mrb[0].mxu0
    %v1977 = vadd.f32 0.0, %v1976
    %v1978 = vpop.f32.mrb[0].mxu0
    %v1979 = vpop.f32.mrb[0].mxu0
    %v1980 = vadd.f32 0.0, %v1979
    %v1981 = vpop.f32.mrb[0].mxu0
    %1982 = vmatprep.mubr.bf16.mxu0 0
    %1983 = vmatmul.mubr.bf16.gmra.mrb[0].mxu0 %v1110
    %v1984 = vpop.f32.mrb[0].mxu0
    %v1985 = vadd.f32 0.0, %v1984
    %v1986 = vpop.f32.mrb[0].mxu0
    %v1987 = vpop.f32.mrb[0].mxu0
    %v1988 = vadd.f32 0.0, %v1987
    %v1989 = vpop.f32.mrb[0].mxu0
    %1990 = vdwg.mxu0
    %v1991 = vmul.f32 %v1961, %v1183
    %v1992 = vmul.f32 %v1964, %v1188
    %v1993 = vmul.f32 %v1969, %v1193
    %v1994 = vmul.f32 %v1972, %v1198
    %v1995 = vmul.f32 %v1977, %v1203
    %v1996 = vmul.f32 %v1980, %v1208
    %v1997 = vmul.f32 %v1985, %v1213
    %v1998 = vmul.f32 %v1988, %v1218
    %v1999 = vpack.c.bf16 %v1992, %v1991
    %v2000 = vpack.c.bf16 %v1994, %v1993
    %v2001 = vpack.c.bf16 %v1996, %v1995
    %v2002 = vpack.c.bf16 %v1998, %v1997
    %v2003 = vld [vmem:[#allocation11] sm:$0xf]
    %v2004 = vld [vmem:[#allocation11 + $0x4] sm:$0xf]
    %v2005 = vld [vmem:[#allocation11 + $0x8] sm:$0xf]
    %v2006 = vld [vmem:[#allocation11 + $0xc] sm:$0xf]
    %v2007 = vld [vmem:[#allocation11 + $0x10] sm:$0xf]
    %v2008 = vld [vmem:[#allocation11 + $0x14] sm:$0xf]
    %v2009 = vld [vmem:[#allocation11 + $0x18] sm:$0xf]
    %v2010 = vld [vmem:[#allocation11 + $0x1c] sm:$0xf]
    %v2011 = vld [vmem:[#allocation11 + $0x20] sm:$0xf]
    %v2012 = vld [vmem:[#allocation11 + $0x24] sm:$0xf]
    %v2013 = vld [vmem:[#allocation11 + $0x28] sm:$0xf]
    %v2014 = vld [vmem:[#allocation11 + $0x2c] sm:$0xf]
    %v2015 = vld [vmem:[#allocation11 + $0x30] sm:$0xf]
    %v2016 = vld [vmem:[#allocation11 + $0x34] sm:$0xf]
    %v2017 = vld [vmem:[#allocation11 + $0x38] sm:$0xf]
    %v2018 = vld [vmem:[#allocation11 + $0x3c] sm:$0xf]
    %v2019 = vld [vmem:[#allocation11 + $0x40] sm:$0xf]
    %v2020 = vld [vmem:[#allocation11 + $0x44] sm:$0xf]
    %v2021 = vld [vmem:[#allocation11 + $0x48] sm:$0xf]
    %v2022 = vld [vmem:[#allocation11 + $0x4c] sm:$0xf]
    %v2023 = vld [vmem:[#allocation11 + $0x50] sm:$0xf]
    %v2024 = vld [vmem:[#allocation11 + $0x54] sm:$0xf]
    %v2025 = vld [vmem:[#allocation11 + $0x58] sm:$0xf]
    %v2026 = vld [vmem:[#allocation11 + $0x5c] sm:$0xf]
    %v2027 = vld [vmem:[#allocation11 + $0x60] sm:$0xf]
    %v2028 = vld [vmem:[#allocation11 + $0x64] sm:$0xf]
    %v2029 = vld [vmem:[#allocation11 + $0x68] sm:$0xf]
    %v2030 = vld [vmem:[#allocation11 + $0x6c] sm:$0xf]
    %v2031 = vld [vmem:[#allocation11 + $0x70] sm:$0xf]
    %v2032 = vld [vmem:[#allocation11 + $0x74] sm:$0xf]
    %v2033 = vld [vmem:[#allocation11 + $0x78] sm:$0xf]
    %v2034 = vld [vmem:[#allocation11 + $0x7c] sm:$0xf]
    %v2035 = vld [vmem:[%s18] sm:$0x1]
    %v2037 = vlaneseq
    %v2038 = vshrl.u32 %v2037, 7
    %v2039 = vsub.s32 0, %v2038
    %v2040 = vrot.slane %v2035, %v2039
    %v2074 = vunpack.c.l.b16 %v2003
    %v2075 = vunpack.c.l.b16 %v2004
    %v2076 = vunpack.c.l.b16 %v2005
    %v2077 = vunpack.c.l.b16 %v2006
    %v2078 = vunpack.c.l.b16 %v2007
    %v2079 = vunpack.c.l.b16 %v2008
    %v2080 = vunpack.c.l.b16 %v2009
    %v2081 = vunpack.c.l.b16 %v2010
    %v2082 = vunpack.c.l.b16 %v2011
    %v2083 = vunpack.c.l.b16 %v2012
    %v2084 = vunpack.c.l.b16 %v2013
    %v2085 = vunpack.c.l.b16 %v2014
    %v2086 = vunpack.c.l.b16 %v2015
    %v2087 = vunpack.c.l.b16 %v2016
    %v2088 = vunpack.c.l.b16 %v2017
    %v2089 = vunpack.c.l.b16 %v2018
    %v2090 = vunpack.c.l.b16 %v2019
    %v2091 = vunpack.c.l.b16 %v2020
    %v2092 = vunpack.c.l.b16 %v2021
    %v2093 = vunpack.c.l.b16 %v2022
    %v2094 = vunpack.c.l.b16 %v2023
    %v2095 = vunpack.c.l.b16 %v2024
    %v2096 = vunpack.c.l.b16 %v2025
    %v2097 = vunpack.c.l.b16 %v2026
    %v2098 = vunpack.c.l.b16 %v2027
    %v2099 = vunpack.c.l.b16 %v2028
    %v2100 = vunpack.c.l.b16 %v2029
    %v2101 = vunpack.c.l.b16 %v2030
    %v2102 = vunpack.c.l.b16 %v2031
    %v2103 = vunpack.c.l.b16 %v2032
    %v2104 = vunpack.c.l.b16 %v2033
    %v2105 = vunpack.c.l.b16 %v2034
    %v2106 = vpack.c.b16 %v2075, %v2074
    %v2107 = vpack.c.b16 %v2077, %v2076
    %v2108 = vpack.c.b16 %v2079, %v2078
    %v2109 = vpack.c.b16 %v2081, %v2080
    %v2110 = vpack.c.b16 %v2083, %v2082
    %v2111 = vpack.c.b16 %v2085, %v2084
    %v2112 = vpack.c.b16 %v2087, %v2086
    %v2113 = vpack.c.b16 %v2089, %v2088
    %v2114 = vpack.c.b16 %v2091, %v2090
    %v2115 = vpack.c.b16 %v2093, %v2092
    %v2116 = vpack.c.b16 %v2095, %v2094
    %v2117 = vpack.c.b16 %v2097, %v2096
    %v2118 = vpack.c.b16 %v2099, %v2098
    %v2119 = vpack.c.b16 %v2101, %v2100
    %v2120 = vpack.c.b16 %v2103, %v2102
    %v2121 = vpack.c.b16 %v2105, %v2104
    %2138 = vmatprep.subr.bf16.mxu0 0
    %2139 = vmatpush1.bf16.msra.mxu0 %v2106
    %2140 = vmatprep.subr.bf16.mxu0 0
    %2141 = vmatpush1.bf16.msra.mxu0 %v2107
    %2142 = vmatprep.subr.bf16.mxu0 0
    %2143 = vmatpush1.bf16.msra.mxu0 %v2108
    %2144 = vmatprep.subr.bf16.mxu0 0
    %2145 = vmatpush1.bf16.msra.mxu0 %v2109
    %2146 = vmatprep.subr.bf16.mxu0 0
    %2147 = vmatpush1.bf16.msra.mxu0 %v2110
    %2148 = vmatprep.subr.bf16.mxu0 0
    %2149 = vmatpush1.bf16.msra.mxu0 %v2111
    %2150 = vmatprep.subr.bf16.mxu0 0
    %2151 = vmatpush1.bf16.msra.mxu0 %v2112
    %2152 = vmatprep.subr.bf16.mxu0 0
    %2153 = vmatpush1.bf16.msra.mxu0 %v2113
    %2154 = vmatprep.subr.bf16.mxu0 0
    %2155 = vmatpush1.bf16.msra.mxu0 %v2114
    %2156 = vmatprep.subr.bf16.mxu0 0
    %2157 = vmatpush1.bf16.msra.mxu0 %v2115
    %2158 = vmatprep.subr.bf16.mxu0 0
    %2159 = vmatpush1.bf16.msra.mxu0 %v2116
    %2160 = vmatprep.subr.bf16.mxu0 0
    %2161 = vmatpush1.bf16.msra.mxu0 %v2117
    %2162 = vmatprep.subr.bf16.mxu0 0
    %2163 = vmatpush1.bf16.msra.mxu0 %v2118
    %2164 = vmatprep.subr.bf16.mxu0 0
    %2165 = vmatpush1.bf16.msra.mxu0 %v2119
    %2166 = vmatprep.subr.bf16.mxu0 0
    %2167 = vmatpush1.bf16.msra.mxu0 %v2120
    %2168 = vmatprep.subr.bf16.mxu0 0
    %2169 = vmatpush1.bf16.msra.mxu0 %v2121
    %2170 = vmatprep.mubr.bf16.mxu0 %v1999
    %2171 = vmatmul.mubr.bf16.gmra.mrb[0].mxu0 %v1440
    %v2172 = vpop.f32.mrb[0].mxu0
    %v2173 = vadd.f32 %v2040, %v2172
    %v2174 = vpop.f32.mrb[0].mxu0
    %v2175 = vpop.f32.mrb[0].mxu0
    %v2176 = vadd.f32 %v2040, %v2175
    %v2177 = vpop.f32.mrb[0].mxu0
    %2178 = vmatprep.mubr.bf16.mxu0 %v2000
    %2179 = vmatmul.mubr.bf16.gmra.mrb[0].mxu0 %v1441
    %v2180 = vpop.f32.mrb[0].mxu0
    %v2181 = vadd.f32 %v2040, %v2180
    %v2182 = vpop.f32.mrb[0].mxu0
    %v2183 = vpop.f32.mrb[0].mxu0
    %v2184 = vadd.f32 %v2040, %v2183
    %v2185 = vpop.f32.mrb[0].mxu0
    %2186 = vmatprep.mubr.bf16.mxu0 %v2001
    %2187 = vmatmul.mubr.bf16.gmra.mrb[0].mxu0 %v1442
    %v2188 = vpop.f32.mrb[0].mxu0
    %v2189 = vadd.f32 %v2040, %v2188
    %v2190 = vpop.f32.mrb[0].mxu0
    %v2191 = vpop.f32.mrb[0].mxu0
    %v2192 = vadd.f32 %v2040, %v2191
    %v2193 = vpop.f32.mrb[0].mxu0
    %2194 = vmatprep.mubr.bf16.mxu0 %v2002
    %2195 = vmatmul.mubr.bf16.gmra.mrb[0].mxu0 %v1443
    %v2196 = vpop.f32.mrb[0].mxu0
    %v2197 = vadd.f32 %v2040, %v2196
    %v2198 = vpop.f32.mrb[0].mxu0
    %v2199 = vpop.f32.mrb[0].mxu0
    %v2200 = vadd.f32 %v2040, %v2199
    %v2201 = vpop.f32.mrb[0].mxu0
    %2202 = vdwg.mxu0
    %v2203 = vmax.f32 %v2173, 0.0
    %v2204 = vmax.f32 %v2176, 0.0
    %v2205 = vmax.f32 %v2181, 0.0
    %v2206 = vmax.f32 %v2184, 0.0
    %v2207 = vmax.f32 %v2189, 0.0
    %v2208 = vmax.f32 %v2192, 0.0
    %v2209 = vmax.f32 %v2197, 0.0
    %v2210 = vmax.f32 %v2200, 0.0
    %v2211 = vpack.c.bf16 %v2204, %v2203
    %v2212 = vpack.c.bf16 %v2206, %v2205
    %v2213 = vpack.c.bf16 %v2208, %v2207
    %v2214 = vpack.c.bf16 %v2210, %v2209
    %v2215 = vld [vmem:[#allocation13] sm:$0xf]
    %v2216 = vld [vmem:[#allocation13 + $0x4] sm:$0xf]
    %v2217 = vld [vmem:[#allocation13 + $0x8] sm:$0xf]
    %v2218 = vld [vmem:[#allocation13 + $0xc] sm:$0xf]
    %v2219 = vld [vmem:[#allocation13 + $0x10] sm:$0xf]
    %v2220 = vld [vmem:[#allocation13 + $0x14] sm:$0xf]
    %v2221 = vld [vmem:[#allocation13 + $0x18] sm:$0xf]
    %v2222 = vld [vmem:[#allocation13 + $0x1c] sm:$0xf]
    %v2223 = vld [vmem:[#allocation13 + $0x20] sm:$0xf]
    %v2224 = vld [vmem:[#allocation13 + $0x24] sm:$0xf]
    %v2225 = vld [vmem:[#allocation13 + $0x28] sm:$0xf]
    %v2226 = vld [vmem:[#allocation13 + $0x2c] sm:$0xf]
    %v2227 = vld [vmem:[#allocation13 + $0x30] sm:$0xf]
    %v2228 = vld [vmem:[#allocation13 + $0x34] sm:$0xf]
    %v2229 = vld [vmem:[#allocation13 + $0x38] sm:$0xf]
    %v2230 = vld [vmem:[#allocation13 + $0x3c] sm:$0xf]
    %v2231 = vld [vmem:[%s20] sm:$0x1]
    %v2233 = vlaneseq
    %v2234 = vshrl.u32 %v2233, 7
    %v2235 = vsub.s32 0, %v2234
    %v2236 = vrot.slane %v2231, %v2235
    %v2254 = vunpack.c.l.b16 %v2215
    %v2255 = vunpack.c.l.b16 %v2216
    %v2256 = vunpack.c.l.b16 %v2217
    %v2257 = vunpack.c.l.b16 %v2218
    %v2258 = vunpack.c.l.b16 %v2219
    %v2259 = vunpack.c.l.b16 %v2220
    %v2260 = vunpack.c.l.b16 %v2221
    %v2261 = vunpack.c.l.b16 %v2222
    %v2262 = vunpack.c.l.b16 %v2223
    %v2263 = vunpack.c.l.b16 %v2224
    %v2264 = vunpack.c.l.b16 %v2225
    %v2265 = vunpack.c.l.b16 %v2226
    %v2266 = vunpack.c.l.b16 %v2227
    %v2267 = vunpack.c.l.b16 %v2228
    %v2268 = vunpack.c.l.b16 %v2229
    %v2269 = vunpack.c.l.b16 %v2230
    %v2270 = vpack.c.b16 %v2255, %v2254
    %v2271 = vpack.c.b16 %v2257, %v2256
    %v2272 = vpack.c.b16 %v2259, %v2258
    %v2273 = vpack.c.b16 %v2261, %v2260
    %v2274 = vpack.c.b16 %v2263, %v2262
    %v2275 = vpack.c.b16 %v2265, %v2264
    %v2276 = vpack.c.b16 %v2267, %v2266
    %v2277 = vpack.c.b16 %v2269, %v2268
    %2286 = vmatprep.subr.bf16.mxu0 0
    %2287 = vmatpush1.bf16.msra.mxu0 %v2270
    %2288 = vmatprep.subr.bf16.mxu0 0
    %2289 = vmatpush1.bf16.msra.mxu0 %v2271
    %2290 = vmatprep.subr.bf16.mxu0 0
    %2291 = vmatpush1.bf16.msra.mxu0 %v2272
    %2292 = vmatprep.subr.bf16.mxu0 0
    %2293 = vmatpush1.bf16.msra.mxu0 %v2273
    %2294 = vmatprep.subr.bf16.mxu0 0
    %2295 = vmatpush1.bf16.msra.mxu0 %v2274
    %2296 = vmatprep.subr.bf16.mxu0 0
    %2297 = vmatpush1.bf16.msra.mxu0 %v2275
    %2298 = vmatprep.subr.bf16.mxu0 0
    %2299 = vmatpush1.bf16.msra.mxu0 %v2276
    %2300 = vmatprep.subr.bf16.mxu0 0
    %2301 = vmatpush1.bf16.msra.mxu0 %v2277
    %2302 = vmatprep.subr.bf16.mxu0 0
    %2303 = vmatpush1.bf16.msra.mxu0 0
    %2304 = vmatprep.subr.bf16.mxu0 0
    %2305 = vmatpush1.bf16.msra.mxu0 0
    %2306 = vmatprep.subr.bf16.mxu0 0
    %2307 = vmatpush1.bf16.msra.mxu0 0
    %2308 = vmatprep.subr.bf16.mxu0 0
    %2309 = vmatpush1.bf16.msra.mxu0 0
    %2310 = vmatprep.subr.bf16.mxu0 0
    %2311 = vmatpush1.bf16.msra.mxu0 0
    %2312 = vmatprep.subr.bf16.mxu0 0
    %2313 = vmatpush1.bf16.msra.mxu0 0
    %2314 = vmatprep.subr.bf16.mxu0 0
    %2315 = vmatpush1.bf16.msra.mxu0 0
    %2316 = vmatprep.subr.bf16.mxu0 0
    %2317 = vmatpush1.bf16.msra.mxu0 0
    %2318 = vmatprep.mubr.bf16.mxu0 0
    %2319 = vmatmul.mubr.bf16.gmra.mrb[0].mxu0 %v2211
    %v2320 = vpop.f32.mrb[0].mxu0
    %v2321 = vadd.f32 %v2236, %v2320
    %v2322 = vpop.f32.mrb[0].mxu0
    %v2323 = vpop.f32.mrb[0].mxu0
    %v2324 = vadd.f32 %v2236, %v2323
    %v2325 = vpop.f32.mrb[0].mxu0
    %2326 = vmatprep.mubr.bf16.mxu0 0
    %2327 = vmatmul.mubr.bf16.gmra.mrb[0].mxu0 %v2212
    %v2328 = vpop.f32.mrb[0].mxu0
    %v2329 = vadd.f32 %v2236, %v2328
    %v2330 = vpop.f32.mrb[0].mxu0
    %v2331 = vpop.f32.mrb[0].mxu0
    %v2332 = vadd.f32 %v2236, %v2331
    %v2333 = vpop.f32.mrb[0].mxu0
    %2334 = vmatprep.mubr.bf16.mxu0 0
    %2335 = vmatmul.mubr.bf16.gmra.mrb[0].mxu0 %v2213
    %v2336 = vpop.f32.mrb[0].mxu0
    %v2337 = vadd.f32 %v2236, %v2336
    %v2338 = vpop.f32.mrb[0].mxu0
    %v2339 = vpop.f32.mrb[0].mxu0
    %v2340 = vadd.f32 %v2236, %v2339
    %v2341 = vpop.f32.mrb[0].mxu0
    %2342 = vmatprep.mubr.bf16.mxu0 0
    %2343 = vmatmul.mubr.bf16.gmra.mrb[0].mxu0 %v2214
    %v2344 = vpop.f32.mrb[0].mxu0
    %v2345 = vadd.f32 %v2236, %v2344
    %v2346 = vpop.f32.mrb[0].mxu0
    %v2347 = vpop.f32.mrb[0].mxu0
    %v2348 = vadd.f32 %v2236, %v2347
    %v2349 = vpop.f32.mrb[0].mxu0
    %2350 = vdwg.mxu0
    %v2351 = vmax.f32 %v2321, 0.0
    %v2352 = vmax.f32 %v2324, 0.0
    %v2353 = vmax.f32 %v2329, 0.0
    %v2354 = vmax.f32 %v2332, 0.0
    %v2355 = vmax.f32 %v2337, 0.0
    %v2356 = vmax.f32 %v2340, 0.0
    %v2357 = vmax.f32 %v2345, 0.0
    %v2358 = vmax.f32 %v2348, 0.0
    %v2359 = vpack.c.bf16 %v2352, %v2351
    %v2360 = vpack.c.bf16 %v2354, %v2353
    %v2361 = vpack.c.bf16 %v2356, %v2355
    %v2362 = vpack.c.bf16 %v2358, %v2357
    %v2363 = vld [vmem:[#allocation14] sm:$0xf]
    %v2364 = vld [vmem:[#allocation14 + $0x4] sm:$0xf]
    %v2365 = vld [vmem:[#allocation14 + $0x8] sm:$0xf]
    %v2366 = vld [vmem:[#allocation14 + $0xc] sm:$0xf]
    %v2367 = vld [vmem:[#allocation14 + $0x10] sm:$0xf]
    %v2368 = vld [vmem:[#allocation14 + $0x14] sm:$0xf]
    %v2369 = vld [vmem:[#allocation14 + $0x18] sm:$0xf]
    %v2370 = vld [vmem:[#allocation14 + $0x1c] sm:$0xf]
    %v2371 = vld [vmem:[#allocation14 + $0x20] sm:$0xf]
    %v2372 = vld [vmem:[#allocation14 + $0x24] sm:$0xf]
    %v2373 = vld [vmem:[#allocation14 + $0x28] sm:$0xf]
    %v2374 = vld [vmem:[#allocation14 + $0x2c] sm:$0xf]
    %v2375 = vld [vmem:[#allocation14 + $0x30] sm:$0xf]
    %v2376 = vld [vmem:[#allocation14 + $0x34] sm:$0xf]
    %v2377 = vld [vmem:[#allocation14 + $0x38] sm:$0xf]
    %v2378 = vld [vmem:[#allocation14 + $0x3c] sm:$0xf]
    %v2379 = vld [vmem:[%s22] sm:$0x1]
    %v2381 = vlaneseq
    %v2382 = vshrl.u32 %v2381, 7
    %v2383 = vsub.s32 0, %v2382
    %v2384 = vrot.slane %v2379, %v2383
    %v2402 = vunpack.c.l.b16 %v2363
    %v2403 = vunpack.c.l.b16 %v2364
    %v2404 = vunpack.c.l.b16 %v2365
    %v2405 = vunpack.c.l.b16 %v2366
    %v2406 = vunpack.c.l.b16 %v2367
    %v2407 = vunpack.c.l.b16 %v2368
    %v2408 = vunpack.c.l.b16 %v2369
    %v2409 = vunpack.c.l.b16 %v2370
    %v2410 = vunpack.c.l.b16 %v2371
    %v2411 = vunpack.c.l.b16 %v2372
    %v2412 = vunpack.c.l.b16 %v2373
    %v2413 = vunpack.c.l.b16 %v2374
    %v2414 = vunpack.c.l.b16 %v2375
    %v2415 = vunpack.c.l.b16 %v2376
    %v2416 = vunpack.c.l.b16 %v2377
    %v2417 = vunpack.c.l.b16 %v2378
    %v2418 = vpack.c.b16 %v2403, %v2402
    %v2419 = vpack.c.b16 %v2405, %v2404
    %v2420 = vpack.c.b16 %v2407, %v2406
    %v2421 = vpack.c.b16 %v2409, %v2408
    %v2422 = vpack.c.b16 %v2411, %v2410
    %v2423 = vpack.c.b16 %v2413, %v2412
    %v2424 = vpack.c.b16 %v2415, %v2414
    %v2425 = vpack.c.b16 %v2417, %v2416
    %2434 = vmatprep.subr.bf16.mxu0 0
    %2435 = vmatpush1.bf16.msra.mxu0 %v2418
    %2436 = vmatprep.subr.bf16.mxu0 0
    %2437 = vmatpush1.bf16.msra.mxu0 %v2419
    %2438 = vmatprep.subr.bf16.mxu0 0
    %2439 = vmatpush1.bf16.msra.mxu0 %v2420
    %2440 = vmatprep.subr.bf16.mxu0 0
    %2441 = vmatpush1.bf16.msra.mxu0 %v2421
    %2442 = vmatprep.subr.bf16.mxu0 0
    %2443 = vmatpush1.bf16.msra.mxu0 %v2422
    %2444 = vmatprep.subr.bf16.mxu0 0
    %2445 = vmatpush1.bf16.msra.mxu0 %v2423
    %2446 = vmatprep.subr.bf16.mxu0 0
    %2447 = vmatpush1.bf16.msra.mxu0 %v2424
    %2448 = vmatprep.subr.bf16.mxu0 0
    %2449 = vmatpush1.bf16.msra.mxu0 %v2425
    %2450 = vmatprep.subr.bf16.mxu0 0
    %2451 = vmatpush1.bf16.msra.mxu0 0
    %2452 = vmatprep.subr.bf16.mxu0 0
    %2453 = vmatpush1.bf16.msra.mxu0 0
    %2454 = vmatprep.subr.bf16.mxu0 0
    %2455 = vmatpush1.bf16.msra.mxu0 0
    %2456 = vmatprep.subr.bf16.mxu0 0
    %2457 = vmatpush1.bf16.msra.mxu0 0
    %2458 = vmatprep.subr.bf16.mxu0 0
    %2459 = vmatpush1.bf16.msra.mxu0 0
    %2460 = vmatprep.subr.bf16.mxu0 0
    %2461 = vmatpush1.bf16.msra.mxu0 0
    %2462 = vmatprep.subr.bf16.mxu0 0
    %2463 = vmatpush1.bf16.msra.mxu0 0
    %2464 = vmatprep.subr.bf16.mxu0 0
    %2465 = vmatpush1.bf16.msra.mxu0 0
    %2466 = vmatprep.mubr.bf16.mxu0 0
    %2467 = vmatmul.mubr.bf16.gmra.mrb[0].mxu0 %v2359
    %v2468 = vpop.f32.mrb[0].mxu0
    %v2469 = vadd.f32 %v2384, %v2468
    %v2470 = vpop.f32.mrb[0].mxu0
    %v2471 = vpop.f32.mrb[0].mxu0
    %v2472 = vadd.f32 %v2384, %v2471
    %v2473 = vpop.f32.mrb[0].mxu0
    %2474 = vmatprep.mubr.bf16.mxu0 0
    %2475 = vmatmul.mubr.bf16.gmra.mrb[0].mxu0 %v2360
    %v2476 = vpop.f32.mrb[0].mxu0
    %v2477 = vadd.f32 %v2384, %v2476
    %v2478 = vpop.f32.mrb[0].mxu0
    %v2479 = vpop.f32.mrb[0].mxu0
    %v2480 = vadd.f32 %v2384, %v2479
    %v2481 = vpop.f32.mrb[0].mxu0
    %2482 = vmatprep.mubr.bf16.mxu0 0
    %2483 = vmatmul.mubr.bf16.gmra.mrb[0].mxu0 %v2361
    %v2484 = vpop.f32.mrb[0].mxu0
    %v2485 = vadd.f32 %v2384, %v2484
    %v2486 = vpop.f32.mrb[0].mxu0
    %v2487 = vpop.f32.mrb[0].mxu0
    %v2488 = vadd.f32 %v2384, %v2487
    %v2489 = vpop.f32.mrb[0].mxu0
    %2490 = vmatprep.mubr.bf16.mxu0 0
    %2491 = vmatmul.mubr.bf16.gmra.mrb[0].mxu0 %v2362
    %v2492 = vpop.f32.mrb[0].mxu0
    %v2493 = vadd.f32 %v2384, %v2492
    %v2494 = vpop.f32.mrb[0].mxu0
    %v2495 = vpop.f32.mrb[0].mxu0
    %v2496 = vadd.f32 %v2384, %v2495
    %v2497 = vpop.f32.mrb[0].mxu0
    %2498 = vdwg.mxu0
    %v2499 = vmax.f32 %v2469, 0.0
    %v2500 = vmax.f32 %v2472, 0.0
    %v2501 = vmax.f32 %v2477, 0.0
    %v2502 = vmax.f32 %v2480, 0.0
    %v2503 = vmax.f32 %v2485, 0.0
    %v2504 = vmax.f32 %v2488, 0.0
    %v2505 = vmax.f32 %v2493, 0.0
    %v2506 = vmax.f32 %v2496, 0.0
    %2507 = vst [vmem:[#allocation16] sm:$0xff] %v2499
    %2508 = vst [vmem:[#allocation16 + $0x8] sm:$0xff] %v2500
    %2509 = vst [vmem:[#allocation16 + $0x10] sm:$0xff] %v2501
    %2510 = vst [vmem:[#allocation16 + $0x18] sm:$0xff] %v2502
    %2511 = vst [vmem:[#allocation16 + $0x20] sm:$0xff] %v2503
    %2512 = vst [vmem:[#allocation16 + $0x28] sm:$0xff] %v2504
    %2513 = vst [vmem:[#allocation16 + $0x30] sm:$0xff] %v2505
    %2514 = vst [vmem:[#allocation16 + $0x38] sm:$0xff] %v2506
    // Predicated region
    $region126: #{tpu_custom_call.1} parent=1 // pred_check
      _
    $region127: #{tpu_custom_call.1} parent=1 // pred_check_branch
      %2516 = sbr.rel (0) target = $region129
    $region128: #{tpu_custom_call.1} parent=1 // pred_region
      %s2518 = ssub.s32 1024, 1024
      %2519 = vsyncadd [#allocation4], %s2518
      %s2520 = sshll.u32 [#allocation16], 4
      %s2521 = int_to_ptr.vmem [resolvable:$true] %s2520
      %2526 = dma.vmem_to_hbm [thread:$0]  %s2521, 1024, %s23, [#allocation4], 128, 128, 8
    $region129: #{tpu_custom_call.1} parent=1 // pred_fallthru
      _
    // Predicated region
    $region130: #{tpu_custom_call.1} parent=1 // pred_check
      _
    $region131: #{tpu_custom_call.1} parent=1 // pred_check_branch
      %2528 = sbr.rel (0) target = $region133
    $region132: #{tpu_custom_call.1} parent=1 // pred_region
      %2529 = dma.done [#allocation4], 1024
    $region133: #{tpu_custom_call.1} parent=1 // pred_fallthru
      _
    %2530 = vsyncpa [#allocation3], 1
    %2531 = vsyncpa [#allocation6], 1
    %2532 = vsyncpa [#allocation9], 1
    %2533 = vsyncpa [#allocation12], 1
    %2534 = vsyncpa [#allocation15], 1
    %2535 = vsyncpa [#allocation4], 1

</llo_original>
